<compile_context>
chip_gen: v7x
topology: tpu7x:2x2x1
jax: 0.10.0
libtpu: 0.0.40
codegen_flags: <defaults>
</compile_context>

<pallas_src>
import functools
import math

import jax
import jax.numpy as jnp
from jax.experimental import pallas as pl
from jax.experimental.pallas import tpu as pltpu


def _ln(x, w, b, eps=1e-12):
    # TF-style layernorm over the last axis (matches the torch LayerNorm).
    u = jnp.mean(x, axis=-1, keepdims=True)
    d = x - u
    s = jnp.mean(d * d, axis=-1, keepdims=True)
    return w * (d * jax.lax.rsqrt(s + eps)) + b


def dss_encoder_kernel(z_ref, prm_ref, out_ref, *, T, H, K):
    Bb = z_ref.shape[0]
    inv_sqrt_h = 1.0 / math.sqrt(H)

    z3 = z_ref[...]                       # (Bb, T, H)
    prm = prm_ref[...]                    # (12 + K + T + K + H, H)

    # ---- unpack the fused parameter tensor (static row slices) ----
    ln1w, ln1b = prm[0:1], prm[1:2]
    ln2w, ln2b = prm[2:3], prm[3:4]
    ln3w, ln3b = prm[4:5], prm[5:6]
    ln4w, ln4b = prm[6:7], prm[7:8]
    ln5w, ln5b = prm[8:9], prm[9:10]
    w_bias = prm[10:11]
    q_bias = prm[11:12]                   # b_prime + alphas[-1] (precomputed)
    o = 12
    protos = prm[o:o + K]                 # (K, H)
    alphas = prm[o + K:o + K + T]         # (T, H)
    beta = prm[o + K + T:o + 2 * K + T]   # (K, H)
    w_w = prm[o + 2 * K + T:o + 2 * K + T + H]   # (H, H), nn.Linear layout (out, in)

    zf = z3.reshape(Bb * T, H)            # merge leading dims -> one big GEMM operand

    # ---- _intention_clustering: softmax over K of <LN1(z), LN2(proto_k)>/sqrt(H)
    zn = _ln(zf, ln1w, ln1b)              # (Bb*T, H)
    pn = _ln(protos, ln2w, ln2b)          # (K, H)
    scores = jax.lax.dot_general(zn, pn, (((1,), (1,)), ((), ())),
                                 preferred_element_type=jnp.float32) * inv_sqrt_h
    scores = scores - jnp.max(scores, axis=-1, keepdims=True)   # stabilized
    e_k = jnp.exp(scores)
    p_k_i = e_k * pl.reciprocal(jnp.sum(e_k, axis=-1, keepdims=True),
                                approx=True)                    # (Bb*T, K)

    # ---- _intention_weighting: softmax over positions T
    kt = _ln((z3 + alphas[None]).reshape(Bb * T, H), ln3w, ln3b)  # (Bb*T, H)
    proj = jax.lax.dot_general(kt, w_w, (((1,), (1,)), ((), ())),
                               preferred_element_type=jnp.float32) + w_bias
    keys = (kt + jnp.maximum(proj, 0.0)).reshape(Bb, T, H)        # (Bb, T, H)
    query = _ln(q_bias + z3[:, T - 1, :], ln4w, ln4b)             # (Bb, H)
    # VPU multiply + reduce instead of a degenerate (T,H)x(H,1) MXU matmul.
    nums = jnp.sum(keys * query[:, None, :], axis=-1, keepdims=True) * inv_sqrt_h
    nums = nums - jnp.max(nums, axis=1, keepdims=True)            # (Bb, T, 1)
    e_t = jnp.exp(nums)
    p_i = e_t * pl.reciprocal(jnp.sum(e_t, axis=1, keepdims=True),
                              approx=True)                        # (Bb, T, 1)

    # ---- _intention_aggr: (attn^T @ z) + beta, then LN5; lane-dense store
    zw = p_i * z3                                                 # (Bb, T, H)
    pk3 = p_k_i.reshape(Bb, T, K)                                 # (Bb, T, K)
    for k in range(K):  # K is tiny and static; VPU mul + sublane reduce per intent
        enc_k = beta[k:k + 1, :] + jnp.sum(pk3[:, :, k:k + 1] * zw, axis=1)  # (Bb, H)
        out_ref[:, k * H:(k + 1) * H] = _ln(enc_k, ln5w, ln5b)


def dss_encoder(is_input_seq: bool, z, params, *, block_b=None):
    B, T, H = z.shape
    K = params["prototypes"].shape[0]
    beta = params["beta_input_seq"] if is_input_seq else params["beta_label_seq"]

    # Batch tiling: ~256 rows of (., H) per block fills the f32 sublanes / MXU,
    # but keep >= 2 grid blocks once B is large enough so v7x's 2 TensorCores
    # both get work. Round to a multiple of 8 sublanes for the lane-dense
    # (block_b, K*H) output tile.
    if block_b is None:
        block_b = max(1, 256 // max(T, 1))
        block_b = min(block_b, -(-B // 2))
    block_b = max(8, -(-block_b // 8) * 8)
    B_pad = -(-B // block_b) * block_b
    if B_pad != B:
        z = jnp.pad(z, ((0, B_pad - B), (0, 0), (0, 0)))
    z = z.astype(jnp.float32)

    # Fuse every parameter into one (P, H) tensor -> a single DMA per grid step.
    def r(x):
        return jnp.asarray(x, jnp.float32).reshape(1, H)

    q_bias = r(params["b_prime"] + params["alphas"][-1])
    packed = jnp.concatenate(
        [r(params["ln1_w"]), r(params["ln1_b"]),
         r(params["ln2_w"]), r(params["ln2_b"]),
         r(params["ln3_w"]), r(params["ln3_b"]),
         r(params["ln4_w"]), r(params["ln4_b"]),
         r(params["ln5_w"]), r(params["ln5_b"]),
         r(params["w_bias"]), q_bias,
         jnp.asarray(params["prototypes"], jnp.float32),
         jnp.asarray(params["alphas"], jnp.float32),
         jnp.asarray(beta, jnp.float32),
         jnp.asarray(params["w_weight"], jnp.float32)],
        axis=0)                                   # (12 + K + T + K + H, H)
    P = packed.shape[0]

    kernel = functools.partial(dss_encoder_kernel, T=T, H=H, K=K)
    out = pl.pallas_call(
        kernel,
        out_shape=jax.ShapeDtypeStruct((B_pad, K * H), jnp.float32),
        grid=(B_pad // block_b,),
        in_specs=[pl.BlockSpec((block_b, T, H), lambda b: (b, 0, 0)),
                  pl.BlockSpec((P, H), lambda b: (0, 0))],
        out_specs=pl.BlockSpec((block_b, K * H), lambda b: (b, 0)),
        compiler_params=pltpu.CompilerParams(dimension_semantics=("parallel",)),
    )(z, packed)

    return out[:B].reshape(B, K, H)


def dss_encoder_ref(is_input_seq: bool, z, p):
    """Pure-JAX reference mirroring the PyTorch forward exactly."""
    H = z.shape[-1]
    zn = _ln(z, p["ln1_w"], p["ln1_b"])
    pn = _ln(p["prototypes"], p["ln2_w"], p["ln2_b"])
    scores = jnp.einsum("bth,kh->btk", zn, pn)
    e = jnp.exp(scores / jnp.sqrt(H))
    pki = e / e.sum(-1, keepdims=True)

    kt = _ln(z + p["alphas"], p["ln3_w"], p["ln3_b"])
    keys = kt + jax.nn.relu(kt @ p["w_weight"].T + p["w_bias"])
    q = _ln(p["b_prime"] + p["alphas"][-1] + z[:, -1, :], p["ln4_w"], p["ln4_b"])
    nums = jnp.einsum("bth,bh->bt", keys, q)
    en = jnp.exp(nums / jnp.sqrt(H))
    pi = en / en.sum(1, keepdims=True)

    attn = pki * pi[..., None]
    beta = p["beta_input_seq"] if is_input_seq else p["beta_label_seq"]
    enc = beta + jnp.einsum("btk,bth->bkh", attn, z)
    return _ln(enc, p["ln5_w"], p["ln5_b"])


if __name__ == "__main__":
    # args: hidden_size=32, max_seq_length=8, num_intents=4; batch=2
    B, T, H, K = 2, 8, 32, 4
    key = jax.random.PRNGKey(0)
    kz, kp, kw, kwb, kbi, kbl, kbp, kal = jax.random.split(key, 8)

    params = dict(
        prototypes=jax.random.normal(kp, (K, H), jnp.float32) / jnp.sqrt(H),
        ln1_w=jnp.ones((H,), jnp.float32), ln1_b=jnp.zeros((H,), jnp.float32),
        ln2_w=jnp.ones((H,), jnp.float32), ln2_b=jnp.zeros((H,), jnp.float32),
        ln3_w=jnp.ones((H,), jnp.float32), ln3_b=jnp.zeros((H,), jnp.float32),
        ln4_w=jnp.ones((H,), jnp.float32), ln4_b=jnp.zeros((H,), jnp.float32),
        ln5_w=jnp.ones((H,), jnp.float32), ln5_b=jnp.zeros((H,), jnp.float32),
        w_weight=jax.random.normal(kw, (H, H), jnp.float32) / jnp.sqrt(H),
        w_bias=jax.random.normal(kwb, (H,), jnp.float32) * 0.02,
        b_prime=jax.random.normal(kbp, (H,), jnp.float32) * 0.02,
        alphas=jax.random.normal(kal, (T, H), jnp.float32) * 0.02,
        beta_input_seq=jax.random.normal(kbi, (K, H), jnp.float32) / jnp.sqrt(H),
        beta_label_seq=jax.random.normal(kbl, (K, H), jnp.float32) / jnp.sqrt(H),
    )

    z = jax.random.normal(kz, (B, T, H), jnp.float32)

    out_in = jax.block_until_ready(dss_encoder(True, z, params))
    out_lb = jax.block_until_ready(dss_encoder(False, z, params))

    ref_in = dss_encoder_ref(True, z, params)
    ref_lb = dss_encoder_ref(False, z, params)

    assert out_in.shape == (B, K, H)
    assert jnp.allclose(out_in, ref_in, atol=1e-2, rtol=1e-2), "mismatch (input seq)"
    assert jnp.allclose(out_lb, ref_lb, atol=1e-2, rtol=1e-2), "mismatch (label seq)"

    print("KERNEL_OK")
</pallas_src>

<mosaic_0001>
module attributes {stable_mosaic.version = 11 : i64} {
  func.func @dss_encoder_kernel(%arg0: i32, %arg1: memref<8x8x32xf32, #tpu.memory_space<vmem>>, %arg2: memref<60x32xf32, #tpu.memory_space<vmem>>, %arg3: memref<8x128xf32, #tpu.memory_space<vmem>>) attributes {dimension_semantics = [#tpu.dimension_semantics<parallel>], iteration_bounds = array<i64: 1>, scalar_prefetch = 0 : i64, scratch_operands = 0 : i64, tpu.core_type = #tpu.core_type<tc>, window_params = [{transform_indices = @transform_0, window_bounds = array<i64: 8, 8, 32>}, {pipeline_mode = #tpu.pipeline_mode<synchronous>, transform_indices = @transform_1, window_bounds = array<i64: 60, 32>}, {transform_indices = @transform_2, window_bounds = array<i64: 8, 128>}]} {
    %c0 = arith.constant 0 : index
    %c0_0 = arith.constant 0 : index
    %c0_1 = arith.constant 0 : index
    %0 = vector.load %arg1[%c0, %c0_0, %c0_1] : memref<8x8x32xf32, #tpu.memory_space<vmem>>, vector<8x8x32xf32>
    %c0_2 = arith.constant 0 : index
    %c0_3 = arith.constant 0 : index
    %1 = vector.load %arg2[%c0_2, %c0_3] : memref<60x32xf32, #tpu.memory_space<vmem>>, vector<60x32xf32>
    %2 = vector.extract_strided_slice %1 {offsets = [0, 0], sizes = [1, 32], strides = [1, 1]} : vector<60x32xf32> to vector<1x32xf32>
    %3 = vector.extract_strided_slice %1 {offsets = [1, 0], sizes = [1, 32], strides = [1, 1]} : vector<60x32xf32> to vector<1x32xf32>
    %4 = vector.extract_strided_slice %1 {offsets = [2, 0], sizes = [1, 32], strides = [1, 1]} : vector<60x32xf32> to vector<1x32xf32>
    %5 = vector.extract_strided_slice %1 {offsets = [3, 0], sizes = [1, 32], strides = [1, 1]} : vector<60x32xf32> to vector<1x32xf32>
    %6 = vector.extract_strided_slice %1 {offsets = [4, 0], sizes = [1, 32], strides = [1, 1]} : vector<60x32xf32> to vector<1x32xf32>
    %7 = vector.extract_strided_slice %1 {offsets = [5, 0], sizes = [1, 32], strides = [1, 1]} : vector<60x32xf32> to vector<1x32xf32>
    %8 = vector.extract_strided_slice %1 {offsets = [6, 0], sizes = [1, 32], strides = [1, 1]} : vector<60x32xf32> to vector<1x32xf32>
    %9 = vector.extract_strided_slice %1 {offsets = [7, 0], sizes = [1, 32], strides = [1, 1]} : vector<60x32xf32> to vector<1x32xf32>
    %10 = vector.extract_strided_slice %1 {offsets = [8, 0], sizes = [1, 32], strides = [1, 1]} : vector<60x32xf32> to vector<1x32xf32>
    %11 = vector.extract_strided_slice %1 {offsets = [9, 0], sizes = [1, 32], strides = [1, 1]} : vector<60x32xf32> to vector<1x32xf32>
    %12 = vector.extract_strided_slice %1 {offsets = [10, 0], sizes = [1, 32], strides = [1, 1]} : vector<60x32xf32> to vector<1x32xf32>
    %13 = vector.extract_strided_slice %1 {offsets = [11, 0], sizes = [1, 32], strides = [1, 1]} : vector<60x32xf32> to vector<1x32xf32>
    %14 = vector.extract_strided_slice %1 {offsets = [12, 0], sizes = [4, 32], strides = [1, 1]} : vector<60x32xf32> to vector<4x32xf32>
    %15 = vector.extract_strided_slice %1 {offsets = [16, 0], sizes = [8, 32], strides = [1, 1]} : vector<60x32xf32> to vector<8x32xf32>
    %16 = vector.extract_strided_slice %1 {offsets = [24, 0], sizes = [4, 32], strides = [1, 1]} : vector<60x32xf32> to vector<4x32xf32>
    %17 = vector.extract_strided_slice %1 {offsets = [28, 0], sizes = [32, 32], strides = [1, 1]} : vector<60x32xf32> to vector<32x32xf32>
    %18 = vector.shape_cast %0 : vector<8x8x32xf32> to vector<64x32xf32>
    %cst = arith.constant dense<0.000000e+00> : vector<64xf32>
    %19 = vector.multi_reduction <add>, %18, %cst [1] : vector<64x32xf32> to vector<64xf32>
    %20 = vector.shape_cast %19 : vector<64xf32> to vector<64x1xf32>
    %cst_4 = arith.constant 3.200000e+01 : f32
    %21 = vector.broadcast %cst_4 : f32 to vector<64x1xf32>
    %22 = arith.divf %20, %21 : vector<64x1xf32>
    %23 = vector.broadcast %22 : vector<64x1xf32> to vector<64x32xf32>
    %24 = arith.subf %18, %23 : vector<64x32xf32>
    %25 = arith.mulf %24, %24 : vector<64x32xf32>
    %cst_5 = arith.constant dense<0.000000e+00> : vector<64xf32>
    %26 = vector.multi_reduction <add>, %25, %cst_5 [1] : vector<64x32xf32> to vector<64xf32>
    %27 = vector.shape_cast %26 : vector<64xf32> to vector<64x1xf32>
    %cst_6 = arith.constant 3.200000e+01 : f32
    %28 = vector.broadcast %cst_6 : f32 to vector<64x1xf32>
    %29 = arith.divf %27, %28 : vector<64x1xf32>
    %cst_7 = arith.constant 9.99999996E-13 : f32
    %30 = vector.broadcast %cst_7 : f32 to vector<64x1xf32>
    %31 = arith.addf %29, %30 : vector<64x1xf32>
    %32 = math.rsqrt %31 : vector<64x1xf32>
    %33 = vector.broadcast %32 : vector<64x1xf32> to vector<64x32xf32>
    %34 = arith.mulf %24, %33 : vector<64x32xf32>
    %35 = vector.broadcast %2 : vector<1x32xf32> to vector<64x32xf32>
    %36 = arith.mulf %35, %34 : vector<64x32xf32>
    %37 = vector.broadcast %3 : vector<1x32xf32> to vector<64x32xf32>
    %38 = arith.addf %36, %37 : vector<64x32xf32>
    %cst_8 = arith.constant dense<0.000000e+00> : vector<4xf32>
    %39 = vector.multi_reduction <add>, %14, %cst_8 [1] : vector<4x32xf32> to vector<4xf32>
    %40 = vector.shape_cast %39 : vector<4xf32> to vector<4x1xf32>
    %cst_9 = arith.constant 3.200000e+01 : f32
    %41 = vector.broadcast %cst_9 : f32 to vector<4x1xf32>
    %42 = arith.divf %40, %41 : vector<4x1xf32>
    %43 = vector.broadcast %42 : vector<4x1xf32> to vector<4x32xf32>
    %44 = arith.subf %14, %43 : vector<4x32xf32>
    %45 = arith.mulf %44, %44 : vector<4x32xf32>
    %cst_10 = arith.constant dense<0.000000e+00> : vector<4xf32>
    %46 = vector.multi_reduction <add>, %45, %cst_10 [1] : vector<4x32xf32> to vector<4xf32>
    %47 = vector.shape_cast %46 : vector<4xf32> to vector<4x1xf32>
    %cst_11 = arith.constant 3.200000e+01 : f32
    %48 = vector.broadcast %cst_11 : f32 to vector<4x1xf32>
    %49 = arith.divf %47, %48 : vector<4x1xf32>
    %cst_12 = arith.constant 9.99999996E-13 : f32
    %50 = vector.broadcast %cst_12 : f32 to vector<4x1xf32>
    %51 = arith.addf %49, %50 : vector<4x1xf32>
    %52 = math.rsqrt %51 : vector<4x1xf32>
    %53 = vector.broadcast %52 : vector<4x1xf32> to vector<4x32xf32>
    %54 = arith.mulf %44, %53 : vector<4x32xf32>
    %55 = vector.broadcast %4 : vector<1x32xf32> to vector<4x32xf32>
    %56 = arith.mulf %55, %54 : vector<4x32xf32>
    %57 = vector.broadcast %5 : vector<1x32xf32> to vector<4x32xf32>
    %58 = arith.addf %56, %57 : vector<4x32xf32>
    %cst_13 = arith.constant dense<0.000000e+00> : vector<64x4xf32>
    %59 = tpu.matmul %38, %58, %cst_13 {dimension_numbers = #tpu.dot_dimension_numbers<[1], [1], [0], [0], [0, 0, 1, 0], [], []>} : vector<64x32xf32>, vector<4x32xf32>, vector<64x4xf32> -> vector<64x4xf32>
    %cst_14 = arith.constant 0.176776692 : f32
    %60 = vector.broadcast %cst_14 : f32 to vector<64x4xf32>
    %61 = arith.mulf %59, %60 : vector<64x4xf32>
    %cst_15 = arith.constant dense<0xFF800000> : vector<64xf32>
    %62 = vector.multi_reduction <maximumf>, %61, %cst_15 [1] : vector<64x4xf32> to vector<64xf32>
    %63 = vector.shape_cast %62 : vector<64xf32> to vector<64x1xf32>
    %64 = vector.broadcast %63 : vector<64x1xf32> to vector<64x4xf32>
    %65 = arith.subf %61, %64 : vector<64x4xf32>
    %66 = math.exp %65 : vector<64x4xf32>
    %cst_16 = arith.constant dense<0.000000e+00> : vector<64xf32>
    %67 = vector.multi_reduction <add>, %66, %cst_16 [1] : vector<64x4xf32> to vector<64xf32>
    %68 = vector.shape_cast %67 : vector<64xf32> to vector<64x1xf32>
    %69 = tpu.reciprocal %68 {approx = true} : vector<64x1xf32> -> vector<64x1xf32>
    %70 = vector.broadcast %69 : vector<64x1xf32> to vector<64x4xf32>
    %71 = arith.mulf %66, %70 : vector<64x4xf32>
    %72 = vector.shape_cast %15 : vector<8x32xf32> to vector<1x8x32xf32>
    %73 = vector.broadcast %72 : vector<1x8x32xf32> to vector<8x8x32xf32>
    %74 = arith.addf %0, %73 : vector<8x8x32xf32>
    %75 = vector.shape_cast %74 : vector<8x8x32xf32> to vector<64x32xf32>
    %cst_17 = arith.constant dense<0.000000e+00> : vector<64xf32>
    %76 = vector.multi_reduction <add>, %75, %cst_17 [1] : vector<64x32xf32> to vector<64xf32>
    %77 = vector.shape_cast %76 : vector<64xf32> to vector<64x1xf32>
    %cst_18 = arith.constant 3.200000e+01 : f32
    %78 = vector.broadcast %cst_18 : f32 to vector<64x1xf32>
    %79 = arith.divf %77, %78 : vector<64x1xf32>
    %80 = vector.broadcast %79 : vector<64x1xf32> to vector<64x32xf32>
    %81 = arith.subf %75, %80 : vector<64x32xf32>
    %82 = arith.mulf %81, %81 : vector<64x32xf32>
    %cst_19 = arith.constant dense<0.000000e+00> : vector<64xf32>
    %83 = vector.multi_reduction <add>, %82, %cst_19 [1] : vector<64x32xf32> to vector<64xf32>
    %84 = vector.shape_cast %83 : vector<64xf32> to vector<64x1xf32>
    %cst_20 = arith.constant 3.200000e+01 : f32
    %85 = vector.broadcast %cst_20 : f32 to vector<64x1xf32>
    %86 = arith.divf %84, %85 : vector<64x1xf32>
    %cst_21 = arith.constant 9.99999996E-13 : f32
    %87 = vector.broadcast %cst_21 : f32 to vector<64x1xf32>
    %88 = arith.addf %86, %87 : vector<64x1xf32>
    %89 = math.rsqrt %88 : vector<64x1xf32>
    %90 = vector.broadcast %89 : vector<64x1xf32> to vector<64x32xf32>
    %91 = arith.mulf %81, %90 : vector<64x32xf32>
    %92 = vector.broadcast %6 : vector<1x32xf32> to vector<64x32xf32>
    %93 = arith.mulf %92, %91 : vector<64x32xf32>
    %94 = vector.broadcast %7 : vector<1x32xf32> to vector<64x32xf32>
    %95 = arith.addf %93, %94 : vector<64x32xf32>
    %cst_22 = arith.constant dense<0.000000e+00> : vector<64x32xf32>
    %96 = tpu.matmul %95, %17, %cst_22 {dimension_numbers = #tpu.dot_dimension_numbers<[1], [1], [0], [0], [0, 0, 1, 0], [], []>} : vector<64x32xf32>, vector<32x32xf32>, vector<64x32xf32> -> vector<64x32xf32>
    %97 = vector.broadcast %12 : vector<1x32xf32> to vector<64x32xf32>
    %98 = arith.addf %96, %97 : vector<64x32xf32>
    %cst_23 = arith.constant 0.000000e+00 : f32
    %99 = vector.broadcast %cst_23 : f32 to vector<64x32xf32>
    %100 = arith.maximumf %98, %99 : vector<64x32xf32>
    %101 = arith.addf %95, %100 : vector<64x32xf32>
    %102 = vector.shape_cast %101 : vector<64x32xf32> to vector<8x8x32xf32>
    %103 = vector.extract_strided_slice %0 {offsets = [0, 7, 0], sizes = [8, 1, 32], strides = [1, 1, 1]} : vector<8x8x32xf32> to vector<8x1x32xf32>
    %104 = vector.shape_cast %103 : vector<8x1x32xf32> to vector<8x32xf32>
    %105 = vector.broadcast %13 : vector<1x32xf32> to vector<8x32xf32>
    %106 = arith.addf %105, %104 : vector<8x32xf32>
    %cst_24 = arith.constant dense<0.000000e+00> : vector<8xf32>
    %107 = vector.multi_reduction <add>, %106, %cst_24 [1] : vector<8x32xf32> to vector<8xf32>
    %108 = vector.shape_cast %107 : vector<8xf32> to vector<8x1xf32>
    %cst_25 = arith.constant 3.200000e+01 : f32
    %109 = vector.broadcast %cst_25 : f32 to vector<8x1xf32>
    %110 = arith.divf %108, %109 : vector<8x1xf32>
    %111 = vector.broadcast %110 : vector<8x1xf32> to vector<8x32xf32>
    %112 = arith.subf %106, %111 : vector<8x32xf32>
    %113 = arith.mulf %112, %112 : vector<8x32xf32>
    %cst_26 = arith.constant dense<0.000000e+00> : vector<8xf32>
    %114 = vector.multi_reduction <add>, %113, %cst_26 [1] : vector<8x32xf32> to vector<8xf32>
    %115 = vector.shape_cast %114 : vector<8xf32> to vector<8x1xf32>
    %cst_27 = arith.constant 3.200000e+01 : f32
    %116 = vector.broadcast %cst_27 : f32 to vector<8x1xf32>
    %117 = arith.divf %115, %116 : vector<8x1xf32>
    %cst_28 = arith.constant 9.99999996E-13 : f32
    %118 = vector.broadcast %cst_28 : f32 to vector<8x1xf32>
    %119 = arith.addf %117, %118 : vector<8x1xf32>
    %120 = math.rsqrt %119 : vector<8x1xf32>
    %121 = vector.broadcast %120 : vector<8x1xf32> to vector<8x32xf32>
    %122 = arith.mulf %112, %121 : vector<8x32xf32>
    %123 = vector.broadcast %8 : vector<1x32xf32> to vector<8x32xf32>
    %124 = arith.mulf %123, %122 : vector<8x32xf32>
    %125 = vector.broadcast %9 : vector<1x32xf32> to vector<8x32xf32>
    %126 = arith.addf %124, %125 : vector<8x32xf32>
    %127 = vector.shape_cast %126 : vector<8x32xf32> to vector<8x1x32xf32>
    %128 = vector.broadcast %127 : vector<8x1x32xf32> to vector<8x8x32xf32>
    %129 = arith.mulf %102, %128 : vector<8x8x32xf32>
    %cst_29 = arith.constant dense<0.000000e+00> : vector<8x8xf32>
    %130 = vector.multi_reduction <add>, %129, %cst_29 [2] : vector<8x8x32xf32> to vector<8x8xf32>
    %131 = vector.shape_cast %130 : vector<8x8xf32> to vector<8x8x1xf32>
    %cst_30 = arith.constant 0.176776692 : f32
    %132 = vector.broadcast %cst_30 : f32 to vector<8x8x1xf32>
    %133 = arith.mulf %131, %132 : vector<8x8x1xf32>
    %cst_31 = arith.constant dense<0xFF800000> : vector<8x1xf32>
    %134 = vector.multi_reduction <maximumf>, %133, %cst_31 [1] : vector<8x8x1xf32> to vector<8x1xf32>
    %135 = vector.shape_cast %134 : vector<8x1xf32> to vector<8x1x1xf32>
    %136 = vector.broadcast %135 : vector<8x1x1xf32> to vector<8x8x1xf32>
    %137 = arith.subf %133, %136 : vector<8x8x1xf32>
    %138 = math.exp %137 : vector<8x8x1xf32>
    %cst_32 = arith.constant dense<0.000000e+00> : vector<8x1xf32>
    %139 = vector.multi_reduction <add>, %138, %cst_32 [1] : vector<8x8x1xf32> to vector<8x1xf32>
    %140 = vector.shape_cast %139 : vector<8x1xf32> to vector<8x1x1xf32>
    %141 = tpu.reciprocal %140 {approx = true} : vector<8x1x1xf32> -> vector<8x1x1xf32>
    %142 = vector.broadcast %141 : vector<8x1x1xf32> to vector<8x8x1xf32>
    %143 = arith.mulf %138, %142 : vector<8x8x1xf32>
    %144 = vector.broadcast %143 : vector<8x8x1xf32> to vector<8x8x32xf32>
    %145 = arith.mulf %144, %0 : vector<8x8x32xf32>
    %146 = vector.shape_cast %71 : vector<64x4xf32> to vector<8x8x4xf32>
    %147 = vector.extract_strided_slice %16 {offsets = [0, 0], sizes = [1, 32], strides = [1, 1]} : vector<4x32xf32> to vector<1x32xf32>
    %148 = vector.extract_strided_slice %146 {offsets = [0, 0, 0], sizes = [8, 8, 1], strides = [1, 1, 1]} : vector<8x8x4xf32> to vector<8x8x1xf32>
    %149 = vector.broadcast %148 : vector<8x8x1xf32> to vector<8x8x32xf32>
    %150 = arith.mulf %149, %145 : vector<8x8x32xf32>
    %cst_33 = arith.constant dense<0.000000e+00> : vector<8x32xf32>
    %151 = vector.multi_reduction <add>, %150, %cst_33 [1] : vector<8x8x32xf32> to vector<8x32xf32>
    %152 = vector.broadcast %147 : vector<1x32xf32> to vector<8x32xf32>
    %153 = arith.addf %152, %151 : vector<8x32xf32>
    %cst_34 = arith.constant dense<0.000000e+00> : vector<8xf32>
    %154 = vector.multi_reduction <add>, %153, %cst_34 [1] : vector<8x32xf32> to vector<8xf32>
    %155 = vector.shape_cast %154 : vector<8xf32> to vector<8x1xf32>
    %cst_35 = arith.constant 3.200000e+01 : f32
    %156 = vector.broadcast %cst_35 : f32 to vector<8x1xf32>
    %157 = arith.divf %155, %156 : vector<8x1xf32>
    %158 = vector.broadcast %157 : vector<8x1xf32> to vector<8x32xf32>
    %159 = arith.subf %153, %158 : vector<8x32xf32>
    %160 = arith.mulf %159, %159 : vector<8x32xf32>
    %cst_36 = arith.constant dense<0.000000e+00> : vector<8xf32>
    %161 = vector.multi_reduction <add>, %160, %cst_36 [1] : vector<8x32xf32> to vector<8xf32>
    %162 = vector.shape_cast %161 : vector<8xf32> to vector<8x1xf32>
    %cst_37 = arith.constant 3.200000e+01 : f32
    %163 = vector.broadcast %cst_37 : f32 to vector<8x1xf32>
    %164 = arith.divf %162, %163 : vector<8x1xf32>
    %cst_38 = arith.constant 9.99999996E-13 : f32
    %165 = vector.broadcast %cst_38 : f32 to vector<8x1xf32>
    %166 = arith.addf %164, %165 : vector<8x1xf32>
    %167 = math.rsqrt %166 : vector<8x1xf32>
    %168 = vector.broadcast %167 : vector<8x1xf32> to vector<8x32xf32>
    %169 = arith.mulf %159, %168 : vector<8x32xf32>
    %170 = vector.broadcast %10 : vector<1x32xf32> to vector<8x32xf32>
    %171 = arith.mulf %170, %169 : vector<8x32xf32>
    %172 = vector.broadcast %11 : vector<1x32xf32> to vector<8x32xf32>
    %173 = arith.addf %171, %172 : vector<8x32xf32>
    %c0_39 = arith.constant 0 : index
    %c0_40 = arith.constant 0 : index
    %174 = vector.load %arg3[%c0_39, %c0_40] : memref<8x128xf32, #tpu.memory_space<vmem>>, vector<8x32xf32>
    tpu.vector_store %arg3[%c0_39, %c0_40], %173 {strides = array<i32>} : memref<8x128xf32, #tpu.memory_space<vmem>>, vector<8x32xf32>,
    %175 = vector.extract_strided_slice %16 {offsets = [1, 0], sizes = [1, 32], strides = [1, 1]} : vector<4x32xf32> to vector<1x32xf32>
    %176 = vector.extract_strided_slice %146 {offsets = [0, 0, 1], sizes = [8, 8, 1], strides = [1, 1, 1]} : vector<8x8x4xf32> to vector<8x8x1xf32>
    %177 = vector.broadcast %176 : vector<8x8x1xf32> to vector<8x8x32xf32>
    %178 = arith.mulf %177, %145 : vector<8x8x32xf32>
    %cst_41 = arith.constant dense<0.000000e+00> : vector<8x32xf32>
    %179 = vector.multi_reduction <add>, %178, %cst_41 [1] : vector<8x8x32xf32> to vector<8x32xf32>
    %180 = vector.broadcast %175 : vector<1x32xf32> to vector<8x32xf32>
    %181 = arith.addf %180, %179 : vector<8x32xf32>
    %cst_42 = arith.constant dense<0.000000e+00> : vector<8xf32>
    %182 = vector.multi_reduction <add>, %181, %cst_42 [1] : vector<8x32xf32> to vector<8xf32>
    %183 = vector.shape_cast %182 : vector<8xf32> to vector<8x1xf32>
    %cst_43 = arith.constant 3.200000e+01 : f32
    %184 = vector.broadcast %cst_43 : f32 to vector<8x1xf32>
    %185 = arith.divf %183, %184 : vector<8x1xf32>
    %186 = vector.broadcast %185 : vector<8x1xf32> to vector<8x32xf32>
    %187 = arith.subf %181, %186 : vector<8x32xf32>
    %188 = arith.mulf %187, %187 : vector<8x32xf32>
    %cst_44 = arith.constant dense<0.000000e+00> : vector<8xf32>
    %189 = vector.multi_reduction <add>, %188, %cst_44 [1] : vector<8x32xf32> to vector<8xf32>
    %190 = vector.shape_cast %189 : vector<8xf32> to vector<8x1xf32>
    %cst_45 = arith.constant 3.200000e+01 : f32
    %191 = vector.broadcast %cst_45 : f32 to vector<8x1xf32>
    %192 = arith.divf %190, %191 : vector<8x1xf32>
    %cst_46 = arith.constant 9.99999996E-13 : f32
    %193 = vector.broadcast %cst_46 : f32 to vector<8x1xf32>
    %194 = arith.addf %192, %193 : vector<8x1xf32>
    %195 = math.rsqrt %194 : vector<8x1xf32>
    %196 = vector.broadcast %195 : vector<8x1xf32> to vector<8x32xf32>
    %197 = arith.mulf %187, %196 : vector<8x32xf32>
    %198 = vector.broadcast %10 : vector<1x32xf32> to vector<8x32xf32>
    %199 = arith.mulf %198, %197 : vector<8x32xf32>
    %200 = vector.broadcast %11 : vector<1x32xf32> to vector<8x32xf32>
    %201 = arith.addf %199, %200 : vector<8x32xf32>
    %c0_47 = arith.constant 0 : index
    %c32 = arith.constant 32 : index
    %202 = vector.load %arg3[%c0_47, %c32] : memref<8x128xf32, #tpu.memory_space<vmem>>, vector<8x32xf32>
    tpu.vector_store %arg3[%c0_47, %c32], %201 {strides = array<i32>} : memref<8x128xf32, #tpu.memory_space<vmem>>, vector<8x32xf32>,
    %203 = vector.extract_strided_slice %16 {offsets = [2, 0], sizes = [1, 32], strides = [1, 1]} : vector<4x32xf32> to vector<1x32xf32>
    %204 = vector.extract_strided_slice %146 {offsets = [0, 0, 2], sizes = [8, 8, 1], strides = [1, 1, 1]} : vector<8x8x4xf32> to vector<8x8x1xf32>
    %205 = vector.broadcast %204 : vector<8x8x1xf32> to vector<8x8x32xf32>
    %206 = arith.mulf %205, %145 : vector<8x8x32xf32>
    %cst_48 = arith.constant dense<0.000000e+00> : vector<8x32xf32>
    %207 = vector.multi_reduction <add>, %206, %cst_48 [1] : vector<8x8x32xf32> to vector<8x32xf32>
    %208 = vector.broadcast %203 : vector<1x32xf32> to vector<8x32xf32>
    %209 = arith.addf %208, %207 : vector<8x32xf32>
    %cst_49 = arith.constant dense<0.000000e+00> : vector<8xf32>
    %210 = vector.multi_reduction <add>, %209, %cst_49 [1] : vector<8x32xf32> to vector<8xf32>
    %211 = vector.shape_cast %210 : vector<8xf32> to vector<8x1xf32>
    %cst_50 = arith.constant 3.200000e+01 : f32
    %212 = vector.broadcast %cst_50 : f32 to vector<8x1xf32>
    %213 = arith.divf %211, %212 : vector<8x1xf32>
    %214 = vector.broadcast %213 : vector<8x1xf32> to vector<8x32xf32>
    %215 = arith.subf %209, %214 : vector<8x32xf32>
    %216 = arith.mulf %215, %215 : vector<8x32xf32>
    %cst_51 = arith.constant dense<0.000000e+00> : vector<8xf32>
    %217 = vector.multi_reduction <add>, %216, %cst_51 [1] : vector<8x32xf32> to vector<8xf32>
    %218 = vector.shape_cast %217 : vector<8xf32> to vector<8x1xf32>
    %cst_52 = arith.constant 3.200000e+01 : f32
    %219 = vector.broadcast %cst_52 : f32 to vector<8x1xf32>
    %220 = arith.divf %218, %219 : vector<8x1xf32>
    %cst_53 = arith.constant 9.99999996E-13 : f32
    %221 = vector.broadcast %cst_53 : f32 to vector<8x1xf32>
    %222 = arith.addf %220, %221 : vector<8x1xf32>
    %223 = math.rsqrt %222 : vector<8x1xf32>
    %224 = vector.broadcast %223 : vector<8x1xf32> to vector<8x32xf32>
    %225 = arith.mulf %215, %224 : vector<8x32xf32>
    %226 = vector.broadcast %10 : vector<1x32xf32> to vector<8x32xf32>
    %227 = arith.mulf %226, %225 : vector<8x32xf32>
    %228 = vector.broadcast %11 : vector<1x32xf32> to vector<8x32xf32>
    %229 = arith.addf %227, %228 : vector<8x32xf32>
    %c0_54 = arith.constant 0 : index
    %c64 = arith.constant 64 : index
    %230 = vector.load %arg3[%c0_54, %c64] : memref<8x128xf32, #tpu.memory_space<vmem>>, vector<8x32xf32>
    tpu.vector_store %arg3[%c0_54, %c64], %229 {strides = array<i32>} : memref<8x128xf32, #tpu.memory_space<vmem>>, vector<8x32xf32>,
    %231 = vector.extract_strided_slice %16 {offsets = [3, 0], sizes = [1, 32], strides = [1, 1]} : vector<4x32xf32> to vector<1x32xf32>
    %232 = vector.extract_strided_slice %146 {offsets = [0, 0, 3], sizes = [8, 8, 1], strides = [1, 1, 1]} : vector<8x8x4xf32> to vector<8x8x1xf32>
    %233 = vector.broadcast %232 : vector<8x8x1xf32> to vector<8x8x32xf32>
    %234 = arith.mulf %233, %145 : vector<8x8x32xf32>
    %cst_55 = arith.constant dense<0.000000e+00> : vector<8x32xf32>
    %235 = vector.multi_reduction <add>, %234, %cst_55 [1] : vector<8x8x32xf32> to vector<8x32xf32>
    %236 = vector.broadcast %231 : vector<1x32xf32> to vector<8x32xf32>
    %237 = arith.addf %236, %235 : vector<8x32xf32>
    %cst_56 = arith.constant dense<0.000000e+00> : vector<8xf32>
    %238 = vector.multi_reduction <add>, %237, %cst_56 [1] : vector<8x32xf32> to vector<8xf32>
    %239 = vector.shape_cast %238 : vector<8xf32> to vector<8x1xf32>
    %cst_57 = arith.constant 3.200000e+01 : f32
    %240 = vector.broadcast %cst_57 : f32 to vector<8x1xf32>
    %241 = arith.divf %239, %240 : vector<8x1xf32>
    %242 = vector.broadcast %241 : vector<8x1xf32> to vector<8x32xf32>
    %243 = arith.subf %237, %242 : vector<8x32xf32>
    %244 = arith.mulf %243, %243 : vector<8x32xf32>
    %cst_58 = arith.constant dense<0.000000e+00> : vector<8xf32>
    %245 = vector.multi_reduction <add>, %244, %cst_58 [1] : vector<8x32xf32> to vector<8xf32>
    %246 = vector.shape_cast %245 : vector<8xf32> to vector<8x1xf32>
    %cst_59 = arith.constant 3.200000e+01 : f32
    %247 = vector.broadcast %cst_59 : f32 to vector<8x1xf32>
    %248 = arith.divf %246, %247 : vector<8x1xf32>
    %cst_60 = arith.constant 9.99999996E-13 : f32
    %249 = vector.broadcast %cst_60 : f32 to vector<8x1xf32>
    %250 = arith.addf %248, %249 : vector<8x1xf32>
    %251 = math.rsqrt %250 : vector<8x1xf32>
    %252 = vector.broadcast %251 : vector<8x1xf32> to vector<8x32xf32>
    %253 = arith.mulf %243, %252 : vector<8x32xf32>
    %254 = vector.broadcast %10 : vector<1x32xf32> to vector<8x32xf32>
    %255 = arith.mulf %254, %253 : vector<8x32xf32>
    %256 = vector.broadcast %11 : vector<1x32xf32> to vector<8x32xf32>
    %257 = arith.addf %255, %256 : vector<8x32xf32>
    %c0_61 = arith.constant 0 : index
    %c96 = arith.constant 96 : index
    %258 = vector.load %arg3[%c0_61, %c96] : memref<8x128xf32, #tpu.memory_space<vmem>>, vector<8x32xf32>
    tpu.vector_store %arg3[%c0_61, %c96], %257 {strides = array<i32>} : memref<8x128xf32, #tpu.memory_space<vmem>>, vector<8x32xf32>,
    return
  }
  func.func @transform_0(%arg0: i32) -> (i32, i32, i32) {
    %c0_i32 = arith.constant 0 : i32
    %c0_i32_0 = arith.constant 0 : i32
    %c0_i32_1 = arith.constant 0 : i32
    return %arg0, %c0_i32, %c0_i32_0 : i32, i32, i32
  }
  func.func @transform_1(%arg0: i32) -> (i32, i32) {
    %c0_i32 = arith.constant 0 : i32
    %c0_i32_0 = arith.constant 0 : i32
    %c0_i32_1 = arith.constant 0 : i32
    return %c0_i32, %c0_i32_0 : i32, i32
  }
  func.func @transform_2(%arg0: i32) -> (i32, i32) {
    %c0_i32 = arith.constant 0 : i32
    %c0_i32_0 = arith.constant 0 : i32
    return %arg0, %c0_i32 : i32, i32
  }
}

</mosaic_0001>

<llo_original>
// kernel: tpu_custom_call.1
$region0: #{tpu_custom_call.1}
  #allocation0 [shape = 'u32[]', space=smem, size = 0x4, offset = 0x4, fixed_abs, tag = 'smem constant byte address 0x4 - core index']
  #allocation1 [shape = 'u32[144,128]{1,0:T(1,128)}', space=vmem, size = 0x12000, scoped, tag = 'internal scratch']
  %s0 = inlined_call_operand.vmem [shape: f32[8,8,32], index: 0, kind: input, shape index: {}]
  %s1 = inlined_call_operand.vmem [shape: f32[60,32], index: 1, kind: input, shape index: {}]
  %s2 = inlined_call_operand.hbm [shape: f32[8,128], index: 2, kind: output, shape index: {}]
  %s3 = sld [smem:[#allocation0]]
  $region18: #{tpu_custom_call.1} parent=0
    _
  %s5 = ssub.s32 1, %s3
  %s6 = scalar_select 0, %s5, %s3
  $region1: #{tpu_custom_call.1} parent=0
    #allocation2 [shape = 'u8[4096]{0}', space=vmem, size = 0x1000, scoped, tag = 'output window, operand 0, single buffered']
    #allocation3 [shape = 's32[1]{0}', space=sflag, size = 0x4, scoped, tag = 'scoped memory for tpu_custom_call.1']
    %7 = vsyncpa [#allocation3], 0
    // Predicated region
    $region2: #{tpu_custom_call.1} parent=1 // pred_check
      _
    $region3: #{tpu_custom_call.1} parent=1 // pred_check_branch
      %9 = sbr.rel (0) target = $region5
    $region4: #{tpu_custom_call.1} parent=1 // pred_region
      _
    $region5: #{tpu_custom_call.1} parent=1 // pred_fallthru
      _
    // Predicated region
    $region6: #{tpu_custom_call.1} parent=1 // pred_check
      _
    $region7: #{tpu_custom_call.1} parent=1 // pred_check_branch
      %11 = sbr.rel (0) target = $region9
    $region8: #{tpu_custom_call.1} parent=1 // pred_region
      _
    $region9: #{tpu_custom_call.1} parent=1 // pred_fallthru
      _
    %v12 = vld [vmem:[%s0] sm:$0xff]
    %v13 = vld [vmem:[%s0 + $0x8] sm:$0xff]
    %v14 = vld [vmem:[%s0 + $0x10] sm:$0xff]
    %v15 = vld [vmem:[%s0 + $0x18] sm:$0xff]
    %v16 = vld [vmem:[%s0 + $0x20] sm:$0xff]
    %v17 = vld [vmem:[%s0 + $0x28] sm:$0xff]
    %v18 = vld [vmem:[%s0 + $0x30] sm:$0xff]
    %v19 = vld [vmem:[%s0 + $0x38] sm:$0xff]
    %v20 = vld [vmem:[%s1] sm:$0xff]
    %v21 = vld [vmem:[%s1 + $0x8] sm:$0xff]
    %v22 = vld [vmem:[%s1 + $0x10] sm:$0xff]
    %v23 = vld [vmem:[%s1 + $0x18] sm:$0xff]
    %v24 = vld [vmem:[%s1 + $0x20] sm:$0xff]
    %v25 = vld [vmem:[%s1 + $0x28] sm:$0xff]
    %v26 = vld [vmem:[%s1 + $0x30] sm:$0xff]
    %v27 = vld [vmem:[%s1 + $0x38] sm:$0xf]
    %vm28 = vcmask 261120
    %v29 = vsel %vm28, %v12, 0.0
    %30 = vadd.xlane.f32.xlu0 %v29
    %v31 = vpop.xlane.xlu0 %30
    %v32 = vsel %vm28, %v13, 0.0
    %33 = vadd.xlane.f32.xlu0 %v32
    %v34 = vpop.xlane.xlu0 %33
    %v35 = vsel %vm28, %v14, 0.0
    %36 = vadd.xlane.f32.xlu0 %v35
    %v37 = vpop.xlane.xlu0 %36
    %v38 = vsel %vm28, %v15, 0.0
    %39 = vadd.xlane.f32.xlu0 %v38
    %v40 = vpop.xlane.xlu0 %39
    %v41 = vsel %vm28, %v16, 0.0
    %42 = vadd.xlane.f32.xlu0 %v41
    %v43 = vpop.xlane.xlu0 %42
    %v44 = vsel %vm28, %v17, 0.0
    %45 = vadd.xlane.f32.xlu0 %v44
    %v46 = vpop.xlane.xlu0 %45
    %v47 = vsel %vm28, %v18, 0.0
    %48 = vadd.xlane.f32.xlu0 %v47
    %v49 = vpop.xlane.xlu0 %48
    %v50 = vsel %vm28, %v19, 0.0
    %51 = vadd.xlane.f32.xlu0 %v50
    %v52 = vpop.xlane.xlu0 %51
    %v53 = vrcp.pop 32.0
    %v54 = vmul.f32 %v31, %v53
    %v55 = vmul.f32 %v34, %v53
    %v56 = vmul.f32 %v37, %v53
    %v57 = vmul.f32 %v40, %v53
    %v58 = vmul.f32 %v43, %v53
    %v59 = vmul.f32 %v46, %v53
    %v60 = vmul.f32 %v49, %v53
    %v61 = vmul.f32 %v52, %v53
    %v62 = vsub.f32 %v12, %v54
    %v63 = vsub.f32 %v13, %v55
    %v64 = vsub.f32 %v14, %v56
    %v65 = vsub.f32 %v15, %v57
    %v66 = vsub.f32 %v16, %v58
    %v67 = vsub.f32 %v17, %v59
    %v68 = vsub.f32 %v18, %v60
    %v69 = vsub.f32 %v19, %v61
    %v70 = vmul.f32 %v62, %v62
    %v71 = vmul.f32 %v63, %v63
    %v72 = vmul.f32 %v64, %v64
    %v73 = vmul.f32 %v65, %v65
    %v74 = vmul.f32 %v66, %v66
    %v75 = vmul.f32 %v67, %v67
    %v76 = vmul.f32 %v68, %v68
    %v77 = vmul.f32 %v69, %v69
    %v78 = vsel %vm28, %v70, 0.0
    %79 = vadd.xlane.f32.xlu0 %v78
    %v80 = vpop.xlane.xlu0 %79
    %v81 = vsel %vm28, %v71, 0.0
    %82 = vadd.xlane.f32.xlu0 %v81
    %v83 = vpop.xlane.xlu0 %82
    %v84 = vsel %vm28, %v72, 0.0
    %85 = vadd.xlane.f32.xlu0 %v84
    %v86 = vpop.xlane.xlu0 %85
    %v87 = vsel %vm28, %v73, 0.0
    %88 = vadd.xlane.f32.xlu0 %v87
    %v89 = vpop.xlane.xlu0 %88
    %v90 = vsel %vm28, %v74, 0.0
    %91 = vadd.xlane.f32.xlu0 %v90
    %v92 = vpop.xlane.xlu0 %91
    %v93 = vsel %vm28, %v75, 0.0
    %94 = vadd.xlane.f32.xlu0 %v93
    %v95 = vpop.xlane.xlu0 %94
    %v96 = vsel %vm28, %v76, 0.0
    %97 = vadd.xlane.f32.xlu0 %v96
    %v98 = vpop.xlane.xlu0 %97
    %v99 = vsel %vm28, %v77, 0.0
    %100 = vadd.xlane.f32.xlu0 %v99
    %v101 = vpop.xlane.xlu0 %100
    %v102 = vmul.f32 %v80, %v53
    %v103 = vmul.f32 %v83, %v53
    %v104 = vmul.f32 %v86, %v53
    %v105 = vmul.f32 %v89, %v53
    %v106 = vmul.f32 %v92, %v53
    %v107 = vmul.f32 %v95, %v53
    %v108 = vmul.f32 %v98, %v53
    %v109 = vmul.f32 %v101, %v53
    %v110 = vadd.f32 %v102, 1e-12
    %v111 = vadd.f32 %v103, 1e-12
    %v112 = vadd.f32 %v104, 1e-12
    %v113 = vadd.f32 %v105, 1e-12
    %v114 = vadd.f32 %v106, 1e-12
    %v115 = vadd.f32 %v107, 1e-12
    %v116 = vadd.f32 %v108, 1e-12
    %v117 = vadd.f32 %v109, 1e-12
    %v118 = vrsqrt.pop %v110
    %v119 = vrsqrt.pop %v111
    %v120 = vrsqrt.pop %v112
    %v121 = vrsqrt.pop %v113
    %v122 = vrsqrt.pop %v114
    %v123 = vrsqrt.pop %v115
    %v124 = vrsqrt.pop %v116
    %v125 = vrsqrt.pop %v117
    %v126 = vmul.f32 %v62, %v118
    %v127 = vmul.f32 %v63, %v119
    %v128 = vmul.f32 %v64, %v120
    %v129 = vmul.f32 %v65, %v121
    %v130 = vmul.f32 %v66, %v122
    %v131 = vmul.f32 %v67, %v123
    %v132 = vmul.f32 %v68, %v124
    %v133 = vmul.f32 %v69, %v125
    %v134 = vlaneseq
    %v135 = vshrl.u32 %v134, 7
    %v136 = vsub.s32 0, %v135
    %v137 = vrot.slane %v20, %v136
    %v138 = vmul.f32 %v137, %v126
    %v139 = vmul.f32 %v137, %v127
    %v140 = vmul.f32 %v137, %v128
    %v141 = vmul.f32 %v137, %v129
    %v142 = vmul.f32 %v137, %v130
    %v143 = vmul.f32 %v137, %v131
    %v144 = vmul.f32 %v137, %v132
    %v145 = vmul.f32 %v137, %v133
    %v146 = vlaneseq
    %v147 = vshrl.u32 %v146, 7
    %v148 = vsub.s32 1, %v147
    %v149 = vrot.slane %v20, %v148
    %v150 = vadd.f32 %v138, %v149
    %v151 = vadd.f32 %v139, %v149
    %v152 = vadd.f32 %v140, %v149
    %v153 = vadd.f32 %v141, %v149
    %v154 = vadd.f32 %v142, %v149
    %v155 = vadd.f32 %v143, %v149
    %v156 = vadd.f32 %v144, %v149
    %v157 = vadd.f32 %v145, %v149
    %vm158 = vcmask 261124
    %v159 = vsel %vm158, %v21, 0.0
    %160 = vadd.xlane.f32.xlu0 %v159
    %v161 = vpop.xlane.xlu0 %160
    %v162 = vmul.f32 %v161, %v53
    %v163 = vsub.f32 %v21, %v162
    %v164 = vmul.f32 %v163, %v163
    %v165 = vsel %vm158, %v164, 0.0
    %166 = vadd.xlane.f32.xlu0 %v165
    %v167 = vpop.xlane.xlu0 %166
    %v168 = vmul.f32 %v167, %v53
    %v169 = vadd.f32 %v168, 1e-12
    %v170 = vrsqrt.pop %v169
    %v171 = vmul.f32 %v163, %v170
    %v172 = vlaneseq
    %v173 = vshrl.u32 %v172, 7
    %v174 = vsub.s32 2, %v173
    %v175 = vrot.slane %v20, %v174
    %v176 = vmul.f32 %v175, %v171
    %v177 = vlaneseq
    %v178 = vshrl.u32 %v177, 7
    %v179 = vsub.s32 3, %v178
    %v180 = vrot.slane %v20, %v179
    %v181 = vadd.f32 %v176, %v180
    %v183 = vrot.slane %v181, 4
    %v185 = vsel %vm28, %v150, 0
    %v188 = vsel %vm28, %v151, 0
    %v191 = vsel %vm28, %v152, 0
    %v194 = vsel %vm28, %v153, 0
    %v197 = vsel %vm28, %v154, 0
    %v200 = vsel %vm28, %v155, 0
    %v203 = vsel %vm28, %v156, 0
    %v206 = vsel %vm28, %v157, 0
    %v208 = vsel %vm28, %v183, 0
    %210 = vmatprep.subr.mxu0 0.0
    %211 = vmatpush1.xpose.msra.mxu0 %v208
    %212 = vmatprep.subr.mxu0 0.0
    %213 = vmatpush1.xpose.msra.mxu0 0.0
    %214 = vmatprep.subr.mxu0 0.0
    %215 = vmatpush1.xpose.msra.mxu0 0.0
    %216 = vmatprep.subr.mxu0 0.0
    %217 = vmatpush1.xpose.msra.mxu0 0.0
    %218 = vmatprep.subr.mxu0 0.0
    %219 = vmatpush1.xpose.msra.mxu0 0.0
    %220 = vmatprep.subr.mxu0 0.0
    %221 = vmatpush1.xpose.msra.mxu0 0.0
    %222 = vmatprep.subr.mxu0 0.0
    %223 = vmatpush1.xpose.msra.mxu0 0.0
    %224 = vmatprep.subr.mxu0 0.0
    %225 = vmatpush1.xpose.msra.mxu0 0.0
    %226 = vmatprep.subr.mxu0 0.0
    %227 = vmatpush1.xpose.msra.mxu0 0.0
    %228 = vmatprep.subr.mxu0 0.0
    %229 = vmatpush1.xpose.msra.mxu0 0.0
    %230 = vmatprep.subr.mxu0 0.0
    %231 = vmatpush1.xpose.msra.mxu0 0.0
    %232 = vmatprep.subr.mxu0 0.0
    %233 = vmatpush1.xpose.msra.mxu0 0.0
    %234 = vmatprep.subr.mxu0 0.0
    %235 = vmatpush1.xpose.msra.mxu0 0.0
    %236 = vmatprep.subr.mxu0 0.0
    %237 = vmatpush1.xpose.msra.mxu0 0.0
    %238 = vmatprep.subr.mxu0 0.0
    %239 = vmatpush1.xpose.msra.mxu0 0.0
    %240 = vmatprep.subr.mxu0 0.0
    %241 = vmatpush1.xpose.msra.mxu0 0.0
    %242 = vmatprep.subr.mxu0 0.0
    %243 = vmatpush1.xpose.msra.mxu0 0.0
    %244 = vmatprep.subr.mxu0 0.0
    %245 = vmatpush1.xpose.msra.mxu0 0.0
    %246 = vmatprep.subr.mxu0 0.0
    %247 = vmatpush1.xpose.msra.mxu0 0.0
    %248 = vmatprep.subr.mxu0 0.0
    %249 = vmatpush1.xpose.msra.mxu0 0.0
    %250 = vmatprep.subr.mxu0 0.0
    %251 = vmatpush1.xpose.msra.mxu0 0.0
    %252 = vmatprep.subr.mxu0 0.0
    %253 = vmatpush1.xpose.msra.mxu0 0.0
    %254 = vmatprep.subr.mxu0 0.0
    %255 = vmatpush1.xpose.msra.mxu0 0.0
    %256 = vmatprep.subr.mxu0 0.0
    %257 = vmatpush1.xpose.msra.mxu0 0.0
    %258 = vmatprep.subr.mxu0 0.0
    %259 = vmatpush1.xpose.msra.mxu0 0.0
    %260 = vmatprep.subr.mxu0 0.0
    %261 = vmatpush1.xpose.msra.mxu0 0.0
    %262 = vmatprep.subr.mxu0 0.0
    %263 = vmatpush1.xpose.msra.mxu0 0.0
    %264 = vmatprep.subr.mxu0 0.0
    %265 = vmatpush1.xpose.msra.mxu0 0.0
    %266 = vmatprep.subr.mxu0 0.0
    %267 = vmatpush1.xpose.msra.mxu0 0.0
    %268 = vmatprep.subr.mxu0 0.0
    %269 = vmatpush1.xpose.msra.mxu0 0.0
    %270 = vmatprep.subr.mxu0 0.0
    %271 = vmatpush1.xpose.msra.mxu0 0.0
    %272 = vmatprep.subr.mxu0 0.0
    %273 = vmatpush1.xpose.msra.mxu0 0.0
    %274 = vmatprep.mubr.f32.mxu0 0.0
    %275 = vmatmul.mubr.f32.gmra.mrb[0].mxu0 %v185
    %v276 = vpop.f32.mrb[0].mxu0
    %v277 = vadd.f32 0.0, %v276
    %v278 = vpop.f32.mrb[0].mxu0
    %279 = vmatprep.mubr.f32.mxu0 0.0
    %280 = vmatmul.mubr.f32.gmra.mrb[0].mxu0 %v188
    %v281 = vpop.f32.mrb[0].mxu0
    %v282 = vadd.f32 0.0, %v281
    %v283 = vpop.f32.mrb[0].mxu0
    %284 = vmatprep.mubr.f32.mxu0 0.0
    %285 = vmatmul.mubr.f32.gmra.mrb[0].mxu0 %v191
    %v286 = vpop.f32.mrb[0].mxu0
    %v287 = vadd.f32 0.0, %v286
    %v288 = vpop.f32.mrb[0].mxu0
    %289 = vmatprep.mubr.f32.mxu0 0.0
    %290 = vmatmul.mubr.f32.gmra.mrb[0].mxu0 %v194
    %v291 = vpop.f32.mrb[0].mxu0
    %v292 = vadd.f32 0.0, %v291
    %v293 = vpop.f32.mrb[0].mxu0
    %294 = vmatprep.mubr.f32.mxu0 0.0
    %295 = vmatmul.mubr.f32.gmra.mrb[0].mxu0 %v197
    %v296 = vpop.f32.mrb[0].mxu0
    %v297 = vadd.f32 0.0, %v296
    %v298 = vpop.f32.mrb[0].mxu0
    %299 = vmatprep.mubr.f32.mxu0 0.0
    %300 = vmatmul.mubr.f32.gmra.mrb[0].mxu0 %v200
    %v301 = vpop.f32.mrb[0].mxu0
    %v302 = vadd.f32 0.0, %v301
    %v303 = vpop.f32.mrb[0].mxu0
    %304 = vmatprep.mubr.f32.mxu0 0.0
    %305 = vmatmul.mubr.f32.gmra.mrb[0].mxu0 %v203
    %v306 = vpop.f32.mrb[0].mxu0
    %v307 = vadd.f32 0.0, %v306
    %v308 = vpop.f32.mrb[0].mxu0
    %309 = vmatprep.mubr.f32.mxu0 0.0
    %310 = vmatmul.mubr.f32.gmra.mrb[0].mxu0 %v206
    %v311 = vpop.f32.mrb[0].mxu0
    %v312 = vadd.f32 0.0, %v311
    %v313 = vpop.f32.mrb[0].mxu0
    %314 = vdwg.mxu0
    %v315 = vmul.f32 %v277, 0.17677669
    %v316 = vmul.f32 %v282, 0.17677669
    %v317 = vmul.f32 %v287, 0.17677669
    %v318 = vmul.f32 %v292, 0.17677669
    %v319 = vmul.f32 %v297, 0.17677669
    %v320 = vmul.f32 %v302, 0.17677669
    %v321 = vmul.f32 %v307, 0.17677669
    %v322 = vmul.f32 %v312, 0.17677669
    %vm323 = vcmask 31744
    %v324 = vsel %vm323, %v315, -inf
    %325 = vmax.xlane.f32.xlu0 %v324
    %v326 = vpop.xlane.xlu0 %325
    %v327 = vsel %vm323, %v316, -inf
    %328 = vmax.xlane.f32.xlu0 %v327
    %v329 = vpop.xlane.xlu0 %328
    %v330 = vsel %vm323, %v317, -inf
    %331 = vmax.xlane.f32.xlu0 %v330
    %v332 = vpop.xlane.xlu0 %331
    %v333 = vsel %vm323, %v318, -inf
    %334 = vmax.xlane.f32.xlu0 %v333
    %v335 = vpop.xlane.xlu0 %334
    %v336 = vsel %vm323, %v319, -inf
    %337 = vmax.xlane.f32.xlu0 %v336
    %v338 = vpop.xlane.xlu0 %337
    %v339 = vsel %vm323, %v320, -inf
    %340 = vmax.xlane.f32.xlu0 %v339
    %v341 = vpop.xlane.xlu0 %340
    %v342 = vsel %vm323, %v321, -inf
    %343 = vmax.xlane.f32.xlu0 %v342
    %v344 = vpop.xlane.xlu0 %343
    %v345 = vsel %vm323, %v322, -inf
    %346 = vmax.xlane.f32.xlu0 %v345
    %v347 = vpop.xlane.xlu0 %346
    %v348 = vsub.f32 %v315, %v326
    %v349 = vsub.f32 %v316, %v329
    %v350 = vsub.f32 %v317, %v332
    %v351 = vsub.f32 %v318, %v335
    %v352 = vsub.f32 %v319, %v338
    %v353 = vsub.f32 %v320, %v341
    %v354 = vsub.f32 %v321, %v344
    %v355 = vsub.f32 %v322, %v347
    %v356 = vmul.f32 %v348, 1.442695
    %v357 = vpow.pop %v356
    %v358 = vmul.f32 %v349, 1.442695
    %v359 = vpow.pop %v358
    %v360 = vmul.f32 %v350, 1.442695
    %v361 = vpow.pop %v360
    %v362 = vmul.f32 %v351, 1.442695
    %v363 = vpow.pop %v362
    %v364 = vmul.f32 %v352, 1.442695
    %v365 = vpow.pop %v364
    %v366 = vmul.f32 %v353, 1.442695
    %v367 = vpow.pop %v366
    %v368 = vmul.f32 %v354, 1.442695
    %v369 = vpow.pop %v368
    %v370 = vmul.f32 %v355, 1.442695
    %v371 = vpow.pop %v370
    %v372 = vsel %vm323, %v357, 0.0
    %373 = vadd.xlane.f32.xlu0 %v372
    %v374 = vpop.xlane.xlu0 %373
    %v375 = vsel %vm323, %v359, 0.0
    %376 = vadd.xlane.f32.xlu0 %v375
    %v377 = vpop.xlane.xlu0 %376
    %v378 = vsel %vm323, %v361, 0.0
    %379 = vadd.xlane.f32.xlu0 %v378
    %v380 = vpop.xlane.xlu0 %379
    %v381 = vsel %vm323, %v363, 0.0
    %382 = vadd.xlane.f32.xlu0 %v381
    %v383 = vpop.xlane.xlu0 %382
    %v384 = vsel %vm323, %v365, 0.0
    %385 = vadd.xlane.f32.xlu0 %v384
    %v386 = vpop.xlane.xlu0 %385
    %v387 = vsel %vm323, %v367, 0.0
    %388 = vadd.xlane.f32.xlu0 %v387
    %v389 = vpop.xlane.xlu0 %388
    %v390 = vsel %vm323, %v369, 0.0
    %391 = vadd.xlane.f32.xlu0 %v390
    %v392 = vpop.xlane.xlu0 %391
    %v393 = vsel %vm323, %v371, 0.0
    %394 = vadd.xlane.f32.xlu0 %v393
    %v395 = vpop.xlane.xlu0 %394
    %v396 = vrcp.pop %v374
    %v397 = vrcp.pop %v377
    %v398 = vrcp.pop %v380
    %v399 = vrcp.pop %v383
    %v400 = vrcp.pop %v386
    %v401 = vrcp.pop %v389
    %v402 = vrcp.pop %v392
    %v403 = vrcp.pop %v395
    %v404 = vmul.f32 %v357, %v396
    %v405 = vmul.f32 %v359, %v397
    %v406 = vmul.f32 %v361, %v398
    %v407 = vmul.f32 %v363, %v399
    %v408 = vmul.f32 %v365, %v400
    %v409 = vmul.f32 %v367, %v401
    %v410 = vmul.f32 %v369, %v402
    %v411 = vmul.f32 %v371, %v403
    %v412 = vadd.f32 %v12, %v22
    %v413 = vadd.f32 %v13, %v22
    %v414 = vadd.f32 %v14, %v22
    %v415 = vadd.f32 %v15, %v22
    %v416 = vadd.f32 %v16, %v22
    %v417 = vadd.f32 %v17, %v22
    %v418 = vadd.f32 %v18, %v22
    %v419 = vadd.f32 %v19, %v22
    %v420 = vsel %vm28, %v412, 0.0
    %421 = vadd.xlane.f32.xlu0 %v420
    %v422 = vpop.xlane.xlu0 %421
    %v423 = vsel %vm28, %v413, 0.0
    %424 = vadd.xlane.f32.xlu0 %v423
    %v425 = vpop.xlane.xlu0 %424
    %v426 = vsel %vm28, %v414, 0.0
    %427 = vadd.xlane.f32.xlu0 %v426
    %v428 = vpop.xlane.xlu0 %427
    %v429 = vsel %vm28, %v415, 0.0
    %430 = vadd.xlane.f32.xlu0 %v429
    %v431 = vpop.xlane.xlu0 %430
    %v432 = vsel %vm28, %v416, 0.0
    %433 = vadd.xlane.f32.xlu0 %v432
    %v434 = vpop.xlane.xlu0 %433
    %v435 = vsel %vm28, %v417, 0.0
    %436 = vadd.xlane.f32.xlu0 %v435
    %v437 = vpop.xlane.xlu0 %436
    %v438 = vsel %vm28, %v418, 0.0
    %439 = vadd.xlane.f32.xlu0 %v438
    %v440 = vpop.xlane.xlu0 %439
    %v441 = vsel %vm28, %v419, 0.0
    %442 = vadd.xlane.f32.xlu0 %v441
    %v443 = vpop.xlane.xlu0 %442
    %v444 = vmul.f32 %v422, %v53
    %v445 = vmul.f32 %v425, %v53
    %v446 = vmul.f32 %v428, %v53
    %v447 = vmul.f32 %v431, %v53
    %v448 = vmul.f32 %v434, %v53
    %v449 = vmul.f32 %v437, %v53
    %v450 = vmul.f32 %v440, %v53
    %v451 = vmul.f32 %v443, %v53
    %v452 = vsub.f32 %v412, %v444
    %v453 = vsub.f32 %v413, %v445
    %v454 = vsub.f32 %v414, %v446
    %v455 = vsub.f32 %v415, %v447
    %v456 = vsub.f32 %v416, %v448
    %v457 = vsub.f32 %v417, %v449
    %v458 = vsub.f32 %v418, %v450
    %v459 = vsub.f32 %v419, %v451
    %v460 = vmul.f32 %v452, %v452
    %v461 = vmul.f32 %v453, %v453
    %v462 = vmul.f32 %v454, %v454
    %v463 = vmul.f32 %v455, %v455
    %v464 = vmul.f32 %v456, %v456
    %v465 = vmul.f32 %v457, %v457
    %v466 = vmul.f32 %v458, %v458
    %v467 = vmul.f32 %v459, %v459
    %v468 = vsel %vm28, %v460, 0.0
    %469 = vadd.xlane.f32.xlu0 %v468
    %v470 = vpop.xlane.xlu0 %469
    %v471 = vsel %vm28, %v461, 0.0
    %472 = vadd.xlane.f32.xlu0 %v471
    %v473 = vpop.xlane.xlu0 %472
    %v474 = vsel %vm28, %v462, 0.0
    %475 = vadd.xlane.f32.xlu0 %v474
    %v476 = vpop.xlane.xlu0 %475
    %v477 = vsel %vm28, %v463, 0.0
    %478 = vadd.xlane.f32.xlu0 %v477
    %v479 = vpop.xlane.xlu0 %478
    %v480 = vsel %vm28, %v464, 0.0
    %481 = vadd.xlane.f32.xlu0 %v480
    %v482 = vpop.xlane.xlu0 %481
    %v483 = vsel %vm28, %v465, 0.0
    %484 = vadd.xlane.f32.xlu0 %v483
    %v485 = vpop.xlane.xlu0 %484
    %v486 = vsel %vm28, %v466, 0.0
    %487 = vadd.xlane.f32.xlu0 %v486
    %v488 = vpop.xlane.xlu0 %487
    %v489 = vsel %vm28, %v467, 0.0
    %490 = vadd.xlane.f32.xlu0 %v489
    %v491 = vpop.xlane.xlu0 %490
    %v492 = vmul.f32 %v470, %v53
    %v493 = vmul.f32 %v473, %v53
    %v494 = vmul.f32 %v476, %v53
    %v495 = vmul.f32 %v479, %v53
    %v496 = vmul.f32 %v482, %v53
    %v497 = vmul.f32 %v485, %v53
    %v498 = vmul.f32 %v488, %v53
    %v499 = vmul.f32 %v491, %v53
    %v500 = vadd.f32 %v492, 1e-12
    %v501 = vadd.f32 %v493, 1e-12
    %v502 = vadd.f32 %v494, 1e-12
    %v503 = vadd.f32 %v495, 1e-12
    %v504 = vadd.f32 %v496, 1e-12
    %v505 = vadd.f32 %v497, 1e-12
    %v506 = vadd.f32 %v498, 1e-12
    %v507 = vadd.f32 %v499, 1e-12
    %v508 = vrsqrt.pop %v500
    %v509 = vrsqrt.pop %v501
    %v510 = vrsqrt.pop %v502
    %v511 = vrsqrt.pop %v503
    %v512 = vrsqrt.pop %v504
    %v513 = vrsqrt.pop %v505
    %v514 = vrsqrt.pop %v506
    %v515 = vrsqrt.pop %v507
    %v516 = vmul.f32 %v452, %v508
    %v517 = vmul.f32 %v453, %v509
    %v518 = vmul.f32 %v454, %v510
    %v519 = vmul.f32 %v455, %v511
    %v520 = vmul.f32 %v456, %v512
    %v521 = vmul.f32 %v457, %v513
    %v522 = vmul.f32 %v458, %v514
    %v523 = vmul.f32 %v459, %v515
    %v524 = vlaneseq
    %v525 = vshrl.u32 %v524, 7
    %v526 = vsub.s32 4, %v525
    %v527 = vrot.slane %v20, %v526
    %v528 = vmul.f32 %v527, %v516
    %v529 = vmul.f32 %v527, %v517
    %v530 = vmul.f32 %v527, %v518
    %v531 = vmul.f32 %v527, %v519
    %v532 = vmul.f32 %v527, %v520
    %v533 = vmul.f32 %v527, %v521
    %v534 = vmul.f32 %v527, %v522
    %v535 = vmul.f32 %v527, %v523
    %v536 = vlaneseq
    %v537 = vshrl.u32 %v536, 7
    %v538 = vsub.s32 5, %v537
    %v539 = vrot.slane %v20, %v538
    %v540 = vadd.f32 %v528, %v539
    %v541 = vadd.f32 %v529, %v539
    %v542 = vadd.f32 %v530, %v539
    %v543 = vadd.f32 %v531, %v539
    %v544 = vadd.f32 %v532, %v539
    %v545 = vadd.f32 %v533, %v539
    %v546 = vadd.f32 %v534, %v539
    %v547 = vadd.f32 %v535, %v539
    %v548 = vlaneseq
    %v549 = vshrl.u32 %v548, 7
    %v550 = vsub.s32 2, %v549
    %v551 = vrot.slane %v21, %v550
    %vm557 = vcmask 1043456
    %v558 = vrot.slane %v23, 4
    %v559 = vrot.slane %v24, 4
    %v560 = vsel %vm557, %v558, %v559
    %v561 = vrot.slane %v25, 4
    %v562 = vsel %vm557, %v559, %v561
    %v563 = vrot.slane %v26, 4
    %v564 = vsel %vm557, %v561, %v563
    %v565 = vrot.slane %v27, 4
    %v566 = vsel %vm557, %v563, %v565
    %v568 = vsel %vm28, %v540, 0
    %v571 = vsel %vm28, %v541, 0
    %v574 = vsel %vm28, %v542, 0
    %v577 = vsel %vm28, %v543, 0
    %v580 = vsel %vm28, %v544, 0
    %v583 = vsel %vm28, %v545, 0
    %v586 = vsel %vm28, %v546, 0
    %v589 = vsel %vm28, %v547, 0
    %v591 = vsel %vm28, %v560, 0
    %v593 = vsel %vm28, %v562, 0
    %v595 = vsel %vm28, %v564, 0
    %v597 = vsel %vm28, %v566, 0
    %599 = vmatprep.subr.mxu0 0.0
    %600 = vmatpush1.xpose.msra.mxu0 %v591
    %601 = vmatprep.subr.mxu0 0.0
    %602 = vmatpush1.xpose.msra.mxu0 %v593
    %603 = vmatprep.subr.mxu0 0.0
    %604 = vmatpush1.xpose.msra.mxu0 %v595
    %605 = vmatprep.subr.mxu0 0.0
    %606 = vmatpush1.xpose.msra.mxu0 %v597
    %607 = vmatprep.subr.mxu0 0.0
    %608 = vmatpush1.xpose.msra.mxu0 0.0
    %609 = vmatprep.subr.mxu0 0.0
    %610 = vmatpush1.xpose.msra.mxu0 0.0
    %611 = vmatprep.subr.mxu0 0.0
    %612 = vmatpush1.xpose.msra.mxu0 0.0
    %613 = vmatprep.subr.mxu0 0.0
    %614 = vmatpush1.xpose.msra.mxu0 0.0
    %615 = vmatprep.subr.mxu0 0.0
    %616 = vmatpush1.xpose.msra.mxu0 0.0
    %617 = vmatprep.subr.mxu0 0.0
    %618 = vmatpush1.xpose.msra.mxu0 0.0
    %619 = vmatprep.subr.mxu0 0.0
    %620 = vmatpush1.xpose.msra.mxu0 0.0
    %621 = vmatprep.subr.mxu0 0.0
    %622 = vmatpush1.xpose.msra.mxu0 0.0
    %623 = vmatprep.subr.mxu0 0.0
    %624 = vmatpush1.xpose.msra.mxu0 0.0
    %625 = vmatprep.subr.mxu0 0.0
    %626 = vmatpush1.xpose.msra.mxu0 0.0
    %627 = vmatprep.subr.mxu0 0.0
    %628 = vmatpush1.xpose.msra.mxu0 0.0
    %629 = vmatprep.subr.mxu0 0.0
    %630 = vmatpush1.xpose.msra.mxu0 0.0
    %631 = vmatprep.subr.mxu0 0.0
    %632 = vmatpush1.xpose.msra.mxu0 0.0
    %633 = vmatprep.subr.mxu0 0.0
    %634 = vmatpush1.xpose.msra.mxu0 0.0
    %635 = vmatprep.subr.mxu0 0.0
    %636 = vmatpush1.xpose.msra.mxu0 0.0
    %637 = vmatprep.subr.mxu0 0.0
    %638 = vmatpush1.xpose.msra.mxu0 0.0
    %639 = vmatprep.subr.mxu0 0.0
    %640 = vmatpush1.xpose.msra.mxu0 0.0
    %641 = vmatprep.subr.mxu0 0.0
    %642 = vmatpush1.xpose.msra.mxu0 0.0
    %643 = vmatprep.subr.mxu0 0.0
    %644 = vmatpush1.xpose.msra.mxu0 0.0
    %645 = vmatprep.subr.mxu0 0.0
    %646 = vmatpush1.xpose.msra.mxu0 0.0
    %647 = vmatprep.subr.mxu0 0.0
    %648 = vmatpush1.xpose.msra.mxu0 0.0
    %649 = vmatprep.subr.mxu0 0.0
    %650 = vmatpush1.xpose.msra.mxu0 0.0
    %651 = vmatprep.subr.mxu0 0.0
    %652 = vmatpush1.xpose.msra.mxu0 0.0
    %653 = vmatprep.subr.mxu0 0.0
    %654 = vmatpush1.xpose.msra.mxu0 0.0
    %655 = vmatprep.subr.mxu0 0.0
    %656 = vmatpush1.xpose.msra.mxu0 0.0
    %657 = vmatprep.subr.mxu0 0.0
    %658 = vmatpush1.xpose.msra.mxu0 0.0
    %659 = vmatprep.subr.mxu0 0.0
    %660 = vmatpush1.xpose.msra.mxu0 0.0
    %661 = vmatprep.subr.mxu0 0.0
    %662 = vmatpush1.xpose.msra.mxu0 0.0
    %663 = vmatprep.mubr.f32.mxu0 0.0
    %664 = vmatmul.mubr.f32.gmra.mrb[0].mxu0 %v568
    %v665 = vpop.f32.mrb[0].mxu0
    %v666 = vadd.f32 %v551, %v665
    %v667 = vpop.f32.mrb[0].mxu0
    %668 = vmatprep.mubr.f32.mxu0 0.0
    %669 = vmatmul.mubr.f32.gmra.mrb[0].mxu0 %v571
    %v670 = vpop.f32.mrb[0].mxu0
    %v671 = vadd.f32 %v551, %v670
    %v672 = vpop.f32.mrb[0].mxu0
    %673 = vmatprep.mubr.f32.mxu0 0.0
    %674 = vmatmul.mubr.f32.gmra.mrb[0].mxu0 %v574
    %v675 = vpop.f32.mrb[0].mxu0
    %v676 = vadd.f32 %v551, %v675
    %v677 = vpop.f32.mrb[0].mxu0
    %678 = vmatprep.mubr.f32.mxu0 0.0
    %679 = vmatmul.mubr.f32.gmra.mrb[0].mxu0 %v577
    %v680 = vpop.f32.mrb[0].mxu0
    %v681 = vadd.f32 %v551, %v680
    %v682 = vpop.f32.mrb[0].mxu0
    %683 = vmatprep.mubr.f32.mxu0 0.0
    %684 = vmatmul.mubr.f32.gmra.mrb[0].mxu0 %v580
    %v685 = vpop.f32.mrb[0].mxu0
    %v686 = vadd.f32 %v551, %v685
    %v687 = vpop.f32.mrb[0].mxu0
    %688 = vmatprep.mubr.f32.mxu0 0.0
    %689 = vmatmul.mubr.f32.gmra.mrb[0].mxu0 %v583
    %v690 = vpop.f32.mrb[0].mxu0
    %v691 = vadd.f32 %v551, %v690
    %v692 = vpop.f32.mrb[0].mxu0
    %693 = vmatprep.mubr.f32.mxu0 0.0
    %694 = vmatmul.mubr.f32.gmra.mrb[0].mxu0 %v586
    %v695 = vpop.f32.mrb[0].mxu0
    %v696 = vadd.f32 %v551, %v695
    %v697 = vpop.f32.mrb[0].mxu0
    %698 = vmatprep.mubr.f32.mxu0 0.0
    %699 = vmatmul.mubr.f32.gmra.mrb[0].mxu0 %v589
    %v700 = vpop.f32.mrb[0].mxu0
    %v701 = vadd.f32 %v551, %v700
    %v702 = vpop.f32.mrb[0].mxu0
    %703 = vdwg.mxu0
    %v704 = vmax.f32 %v666, 0.0
    %v705 = vmax.f32 %v671, 0.0
    %v706 = vmax.f32 %v676, 0.0
    %v707 = vmax.f32 %v681, 0.0
    %v708 = vmax.f32 %v686, 0.0
    %v709 = vmax.f32 %v691, 0.0
    %v710 = vmax.f32 %v696, 0.0
    %v711 = vmax.f32 %v701, 0.0
    %v712 = vadd.f32 %v540, %v704
    %v713 = vadd.f32 %v541, %v705
    %v714 = vadd.f32 %v542, %v706
    %v715 = vadd.f32 %v543, %v707
    %v716 = vadd.f32 %v544, %v708
    %v717 = vadd.f32 %v545, %v709
    %v718 = vadd.f32 %v546, %v710
    %v719 = vadd.f32 %v547, %v711
    %v720 = vlaneseq
    %v721 = vshrl.u32 %v720, 7
    %v722 = vsub.s32 3, %v721
    %v723 = vrot.slane %v21, %v722
    %v732 = vrot.slane %v12, 7
    %v733 = vrot.slane %v13, 6
    %vm734 = vcmask 1041409
    %v735 = vsel %vm734, %v733, %v732
    %v736 = vrot.slane %v14, 5
    %vm737 = vcmask 1042434
    %v738 = vsel %vm737, %v736, %v735
    %v739 = vrot.slane %v15, 4
    %vm740 = vcmask 1043459
    %v741 = vsel %vm740, %v739, %v738
    %v742 = vrot.slane %v16, 3
    %vm743 = vcmask 1044484
    %v744 = vsel %vm743, %v742, %v741
    %v745 = vrot.slane %v17, 2
    %vm746 = vcmask 1045509
    %v747 = vsel %vm746, %v745, %v744
    %v748 = vrot.slane %v18, 1
    %vm749 = vcmask 1046534
    %v750 = vsel %vm749, %v748, %v747
    %vm751 = vcmask 1047559
    %v752 = vsel %vm751, %v19, %v750
    %v754 = vadd.f32 %v723, %v752
    %v755 = vsel %vm28, %v754, 0.0
    %756 = vadd.xlane.f32.xlu0 %v755
    %v757 = vpop.xlane.xlu0 %756
    %v758 = vmul.f32 %v757, %v53
    %v759 = vsub.f32 %v754, %v758
    %v760 = vmul.f32 %v759, %v759
    %v761 = vsel %vm28, %v760, 0.0
    %762 = vadd.xlane.f32.xlu0 %v761
    %v763 = vpop.xlane.xlu0 %762
    %v764 = vmul.f32 %v763, %v53
    %v765 = vadd.f32 %v764, 1e-12
    %v766 = vrsqrt.pop %v765
    %v767 = vmul.f32 %v759, %v766
    %v768 = vlaneseq
    %v769 = vshrl.u32 %v768, 7
    %v770 = vsub.s32 6, %v769
    %v771 = vrot.slane %v20, %v770
    %v772 = vmul.f32 %v771, %v767
    %v773 = vlaneseq
    %v774 = vshrl.u32 %v773, 7
    %v775 = vsub.s32 7, %v774
    %v776 = vrot.slane %v20, %v775
    %v777 = vadd.f32 %v772, %v776
    %v779 = vcombine.high %v777, %v777
    %v781 = vunpack.c.l.s4 1966171168
    %v782 = vunpack.c.0.s8 %v781
    %v783 = vlaneseq
    %v784 = vshrl.u32 %v783, 7
    %v785 = vsub.s32 %v782, %v784
    %v786 = vrot.slane %v777, %v785
    %v788 = vunpack.c.l.s4 1966171168
    %v789 = vunpack.c.0.s8 %v788
    %v790 = vlaneseq
    %v791 = vshrl.u32 %v790, 7
    %v792 = vsub.s32 %v789, %v791
    %v793 = vrot.slane %v779, %v792
    %v794 = vcombine.high %v786, %v786
    %v795 = vcombine.high %v793, %v793
    %v797 = vunpack.c.l.s4 1966171168
    %v798 = vunpack.c.0.s8 %v797
    %v799 = vlaneseq
    %v800 = vshrl.u32 %v799, 7
    %v801 = vsub.s32 %v798, %v800
    %v802 = vrot.slane %v786, %v801
    %v804 = vunpack.c.l.s4 1966171168
    %v805 = vunpack.c.0.s8 %v804
    %v806 = vlaneseq
    %v807 = vshrl.u32 %v806, 7
    %v808 = vsub.s32 %v805, %v807
    %v809 = vrot.slane %v793, %v808
    %v811 = vunpack.c.l.s4 1966171168
    %v812 = vunpack.c.0.s8 %v811
    %v813 = vlaneseq
    %v814 = vshrl.u32 %v813, 7
    %v815 = vsub.s32 %v812, %v814
    %v816 = vrot.slane %v794, %v815
    %v818 = vunpack.c.l.s4 1966171168
    %v819 = vunpack.c.0.s8 %v818
    %v820 = vlaneseq
    %v821 = vshrl.u32 %v820, 7
    %v822 = vsub.s32 %v819, %v821
    %v823 = vrot.slane %v795, %v822
    %v824 = vcombine.high %v802, %v802
    %v825 = vcombine.high %v809, %v809
    %v826 = vcombine.high %v816, %v816
    %v827 = vcombine.high %v823, %v823
    %v828 = vlaneseq
    %v829 = vshrl.u32 %v828, 7
    %v830 = vsub.s32 0, %v829
    %v831 = vrot.slane %v802, %v830
    %v832 = vlaneseq
    %v833 = vshrl.u32 %v832, 7
    %v834 = vsub.s32 0, %v833
    %v835 = vrot.slane %v816, %v834
    %v836 = vlaneseq
    %v837 = vshrl.u32 %v836, 7
    %v838 = vsub.s32 0, %v837
    %v839 = vrot.slane %v824, %v838
    %v840 = vlaneseq
    %v841 = vshrl.u32 %v840, 7
    %v842 = vsub.s32 0, %v841
    %v843 = vrot.slane %v826, %v842
    %v844 = vlaneseq
    %v845 = vshrl.u32 %v844, 7
    %v846 = vsub.s32 0, %v845
    %v847 = vrot.slane %v809, %v846
    %v848 = vlaneseq
    %v849 = vshrl.u32 %v848, 7
    %v850 = vsub.s32 0, %v849
    %v851 = vrot.slane %v823, %v850
    %v852 = vlaneseq
    %v853 = vshrl.u32 %v852, 7
    %v854 = vsub.s32 0, %v853
    %v855 = vrot.slane %v825, %v854
    %v856 = vlaneseq
    %v857 = vshrl.u32 %v856, 7
    %v858 = vsub.s32 0, %v857
    %v859 = vrot.slane %v827, %v858
    %v868 = vmul.f32 %v712, %v831
    %v869 = vmul.f32 %v713, %v835
    %v870 = vmul.f32 %v714, %v839
    %v871 = vmul.f32 %v715, %v843
    %v872 = vmul.f32 %v716, %v847
    %v873 = vmul.f32 %v717, %v851
    %v874 = vmul.f32 %v718, %v855
    %v875 = vmul.f32 %v719, %v859
    %v876 = vsel %vm28, %v868, 0.0
    %877 = vadd.xlane.f32.xlu0 %v876
    %v878 = vpop.xlane.xlu0 %877
    %v879 = vsel %vm28, %v869, 0.0
    %880 = vadd.xlane.f32.xlu0 %v879
    %v881 = vpop.xlane.xlu0 %880
    %v882 = vsel %vm28, %v870, 0.0
    %883 = vadd.xlane.f32.xlu0 %v882
    %v884 = vpop.xlane.xlu0 %883
    %v885 = vsel %vm28, %v871, 0.0
    %886 = vadd.xlane.f32.xlu0 %v885
    %v887 = vpop.xlane.xlu0 %886
    %v888 = vsel %vm28, %v872, 0.0
    %889 = vadd.xlane.f32.xlu0 %v888
    %v890 = vpop.xlane.xlu0 %889
    %v891 = vsel %vm28, %v873, 0.0
    %892 = vadd.xlane.f32.xlu0 %v891
    %v893 = vpop.xlane.xlu0 %892
    %v894 = vsel %vm28, %v874, 0.0
    %895 = vadd.xlane.f32.xlu0 %v894
    %v896 = vpop.xlane.xlu0 %895
    %v897 = vsel %vm28, %v875, 0.0
    %898 = vadd.xlane.f32.xlu0 %v897
    %v899 = vpop.xlane.xlu0 %898
    %v900 = vmul.f32 %v878, 0.17677669
    %v901 = vmul.f32 %v881, 0.17677669
    %v902 = vmul.f32 %v884, 0.17677669
    %v903 = vmul.f32 %v887, 0.17677669
    %v904 = vmul.f32 %v890, 0.17677669
    %v905 = vmul.f32 %v893, 0.17677669
    %v906 = vmul.f32 %v896, 0.17677669
    %v907 = vmul.f32 %v899, 0.17677669
    %v908 = vrot.slane %v900, 4
    %v909 = vmax.f32 %v900, %v908
    %v910 = vrot.slane %v909, 2
    %v911 = vmax.f32 %v909, %v910
    %v912 = vrot.slane %v911, 1
    %v913 = vmax.f32 %v911, %v912
    %v914 = vrot.slane %v901, 4
    %v915 = vmax.f32 %v901, %v914
    %v916 = vrot.slane %v915, 2
    %v917 = vmax.f32 %v915, %v916
    %v918 = vrot.slane %v917, 1
    %v919 = vmax.f32 %v917, %v918
    %v920 = vrot.slane %v902, 4
    %v921 = vmax.f32 %v902, %v920
    %v922 = vrot.slane %v921, 2
    %v923 = vmax.f32 %v921, %v922
    %v924 = vrot.slane %v923, 1
    %v925 = vmax.f32 %v923, %v924
    %v926 = vrot.slane %v903, 4
    %v927 = vmax.f32 %v903, %v926
    %v928 = vrot.slane %v927, 2
    %v929 = vmax.f32 %v927, %v928
    %v930 = vrot.slane %v929, 1
    %v931 = vmax.f32 %v929, %v930
    %v932 = vrot.slane %v904, 4
    %v933 = vmax.f32 %v904, %v932
    %v934 = vrot.slane %v933, 2
    %v935 = vmax.f32 %v933, %v934
    %v936 = vrot.slane %v935, 1
    %v937 = vmax.f32 %v935, %v936
    %v938 = vrot.slane %v905, 4
    %v939 = vmax.f32 %v905, %v938
    %v940 = vrot.slane %v939, 2
    %v941 = vmax.f32 %v939, %v940
    %v942 = vrot.slane %v941, 1
    %v943 = vmax.f32 %v941, %v942
    %v944 = vrot.slane %v906, 4
    %v945 = vmax.f32 %v906, %v944
    %v946 = vrot.slane %v945, 2
    %v947 = vmax.f32 %v945, %v946
    %v948 = vrot.slane %v947, 1
    %v949 = vmax.f32 %v947, %v948
    %v950 = vrot.slane %v907, 4
    %v951 = vmax.f32 %v907, %v950
    %v952 = vrot.slane %v951, 2
    %v953 = vmax.f32 %v951, %v952
    %v954 = vrot.slane %v953, 1
    %v955 = vmax.f32 %v953, %v954
    %v956 = vsub.f32 %v900, %v913
    %v957 = vsub.f32 %v901, %v919
    %v958 = vsub.f32 %v902, %v925
    %v959 = vsub.f32 %v903, %v931
    %v960 = vsub.f32 %v904, %v937
    %v961 = vsub.f32 %v905, %v943
    %v962 = vsub.f32 %v906, %v949
    %v963 = vsub.f32 %v907, %v955
    %v964 = vmul.f32 %v956, 1.442695
    %v965 = vpow.pop %v964
    %v966 = vmul.f32 %v957, 1.442695
    %v967 = vpow.pop %v966
    %v968 = vmul.f32 %v958, 1.442695
    %v969 = vpow.pop %v968
    %v970 = vmul.f32 %v959, 1.442695
    %v971 = vpow.pop %v970
    %v972 = vmul.f32 %v960, 1.442695
    %v973 = vpow.pop %v972
    %v974 = vmul.f32 %v961, 1.442695
    %v975 = vpow.pop %v974
    %v976 = vmul.f32 %v962, 1.442695
    %v977 = vpow.pop %v976
    %v978 = vmul.f32 %v963, 1.442695
    %v979 = vpow.pop %v978
    %v980 = vrot.slane %v965, 4
    %v981 = vadd.f32 %v965, %v980
    %v982 = vrot.slane %v981, 2
    %v983 = vadd.f32 %v981, %v982
    %v984 = vrot.slane %v983, 1
    %v985 = vadd.f32 %v983, %v984
    %v986 = vrot.slane %v967, 4
    %v987 = vadd.f32 %v967, %v986
    %v988 = vrot.slane %v987, 2
    %v989 = vadd.f32 %v987, %v988
    %v990 = vrot.slane %v989, 1
    %v991 = vadd.f32 %v989, %v990
    %v992 = vrot.slane %v969, 4
    %v993 = vadd.f32 %v969, %v992
    %v994 = vrot.slane %v993, 2
    %v995 = vadd.f32 %v993, %v994
    %v996 = vrot.slane %v995, 1
    %v997 = vadd.f32 %v995, %v996
    %v998 = vrot.slane %v971, 4
    %v999 = vadd.f32 %v971, %v998
    %v1000 = vrot.slane %v999, 2
    %v1001 = vadd.f32 %v999, %v1000
    %v1002 = vrot.slane %v1001, 1
    %v1003 = vadd.f32 %v1001, %v1002
    %v1004 = vrot.slane %v973, 4
    %v1005 = vadd.f32 %v973, %v1004
    %v1006 = vrot.slane %v1005, 2
    %v1007 = vadd.f32 %v1005, %v1006
    %v1008 = vrot.slane %v1007, 1
    %v1009 = vadd.f32 %v1007, %v1008
    %v1010 = vrot.slane %v975, 4
    %v1011 = vadd.f32 %v975, %v1010
    %v1012 = vrot.slane %v1011, 2
    %v1013 = vadd.f32 %v1011, %v1012
    %v1014 = vrot.slane %v1013, 1
    %v1015 = vadd.f32 %v1013, %v1014
    %v1016 = vrot.slane %v977, 4
    %v1017 = vadd.f32 %v977, %v1016
    %v1018 = vrot.slane %v1017, 2
    %v1019 = vadd.f32 %v1017, %v1018
    %v1020 = vrot.slane %v1019, 1
    %v1021 = vadd.f32 %v1019, %v1020
    %v1022 = vrot.slane %v979, 4
    %v1023 = vadd.f32 %v979, %v1022
    %v1024 = vrot.slane %v1023, 2
    %v1025 = vadd.f32 %v1023, %v1024
    %v1026 = vrot.slane %v1025, 1
    %v1027 = vadd.f32 %v1025, %v1026
    %v1028 = vrcp.pop %v985
    %v1029 = vrcp.pop %v991
    %v1030 = vrcp.pop %v997
    %v1031 = vrcp.pop %v1003
    %v1032 = vrcp.pop %v1009
    %v1033 = vrcp.pop %v1015
    %v1034 = vrcp.pop %v1021
    %v1035 = vrcp.pop %v1027
    %v1036 = vmul.f32 %v965, %v1028
    %v1037 = vmul.f32 %v967, %v1029
    %v1038 = vmul.f32 %v969, %v1030
    %v1039 = vmul.f32 %v971, %v1031
    %v1040 = vmul.f32 %v973, %v1032
    %v1041 = vmul.f32 %v975, %v1033
    %v1042 = vmul.f32 %v977, %v1034
    %v1043 = vmul.f32 %v979, %v1035
    %v1044 = vmul.f32 %v1036, %v12
    %v1045 = vmul.f32 %v1037, %v13
    %v1046 = vmul.f32 %v1038, %v14
    %v1047 = vmul.f32 %v1039, %v15
    %v1048 = vmul.f32 %v1040, %v16
    %v1049 = vmul.f32 %v1041, %v17
    %v1050 = vmul.f32 %v1042, %v18
    %v1051 = vmul.f32 %v1043, %v19
    %1053 = vset.pattern.permute.xlu0 0
    %1054 = vperm.xlu0 %1053, %v404
    %v1055 = vpop.permute.xlu0 %1054
    %1058 = vset.pattern.permute.xlu0 0
    %1059 = vperm.xlu0 %1058, %v405
    %v1060 = vpop.permute.xlu0 %1059
    %1063 = vset.pattern.permute.xlu0 0
    %1064 = vperm.xlu0 %1063, %v406
    %v1065 = vpop.permute.xlu0 %1064
    %1068 = vset.pattern.permute.xlu0 0
    %1069 = vperm.xlu0 %1068, %v407
    %v1070 = vpop.permute.xlu0 %1069
    %1073 = vset.pattern.permute.xlu0 0
    %1074 = vperm.xlu0 %1073, %v408
    %v1075 = vpop.permute.xlu0 %1074
    %1078 = vset.pattern.permute.xlu0 0
    %1079 = vperm.xlu0 %1078, %v409
    %v1080 = vpop.permute.xlu0 %1079
    %1083 = vset.pattern.permute.xlu0 0
    %1084 = vperm.xlu0 %1083, %v410
    %v1085 = vpop.permute.xlu0 %1084
    %1088 = vset.pattern.permute.xlu0 0
    %1089 = vperm.xlu0 %1088, %v411
    %v1090 = vpop.permute.xlu0 %1089
    %v1092 = vmul.f32 %v1055, %v1044
    %v1093 = vmul.f32 %v1060, %v1045
    %v1094 = vmul.f32 %v1065, %v1046
    %v1095 = vmul.f32 %v1070, %v1047
    %v1096 = vmul.f32 %v1075, %v1048
    %v1097 = vmul.f32 %v1080, %v1049
    %v1098 = vmul.f32 %v1085, %v1050
    %v1099 = vmul.f32 %v1090, %v1051
    %v1100 = vsel %vm28, %v1092, 0.0
    %v1101 = vrot.slane %v1100, 4
    %v1102 = vadd.f32 %v1100, %v1101
    %v1103 = vrot.slane %v1102, 2
    %v1104 = vadd.f32 %v1102, %v1103
    %v1105 = vrot.slane %v1104, 1
    %v1106 = vadd.f32 %v1104, %v1105
    %v1107 = vsel %vm28, %v1093, 0.0
    %v1108 = vrot.slane %v1107, 4
    %v1109 = vadd.f32 %v1107, %v1108
    %v1110 = vrot.slane %v1109, 2
    %v1111 = vadd.f32 %v1109, %v1110
    %v1112 = vrot.slane %v1111, 1
    %v1113 = vadd.f32 %v1111, %v1112
    %v1114 = vsel %vm28, %v1094, 0.0
    %v1115 = vrot.slane %v1114, 4
    %v1116 = vadd.f32 %v1114, %v1115
    %v1117 = vrot.slane %v1116, 2
    %v1118 = vadd.f32 %v1116, %v1117
    %v1119 = vrot.slane %v1118, 1
    %v1120 = vadd.f32 %v1118, %v1119
    %v1121 = vsel %vm28, %v1095, 0.0
    %v1122 = vrot.slane %v1121, 4
    %v1123 = vadd.f32 %v1121, %v1122
    %v1124 = vrot.slane %v1123, 2
    %v1125 = vadd.f32 %v1123, %v1124
    %v1126 = vrot.slane %v1125, 1
    %v1127 = vadd.f32 %v1125, %v1126
    %v1128 = vsel %vm28, %v1096, 0.0
    %v1129 = vrot.slane %v1128, 4
    %v1130 = vadd.f32 %v1128, %v1129
    %v1131 = vrot.slane %v1130, 2
    %v1132 = vadd.f32 %v1130, %v1131
    %v1133 = vrot.slane %v1132, 1
    %v1134 = vadd.f32 %v1132, %v1133
    %v1135 = vsel %vm28, %v1097, 0.0
    %v1136 = vrot.slane %v1135, 4
    %v1137 = vadd.f32 %v1135, %v1136
    %v1138 = vrot.slane %v1137, 2
    %v1139 = vadd.f32 %v1137, %v1138
    %v1140 = vrot.slane %v1139, 1
    %v1141 = vadd.f32 %v1139, %v1140
    %v1142 = vsel %vm28, %v1098, 0.0
    %v1143 = vrot.slane %v1142, 4
    %v1144 = vadd.f32 %v1142, %v1143
    %v1145 = vrot.slane %v1144, 2
    %v1146 = vadd.f32 %v1144, %v1145
    %v1147 = vrot.slane %v1146, 1
    %v1148 = vadd.f32 %v1146, %v1147
    %v1149 = vsel %vm28, %v1099, 0.0
    %v1150 = vrot.slane %v1149, 4
    %v1151 = vadd.f32 %v1149, %v1150
    %v1152 = vrot.slane %v1151, 2
    %v1153 = vadd.f32 %v1151, %v1152
    %v1154 = vrot.slane %v1153, 1
    %v1155 = vadd.f32 %v1153, %v1154
    %v1156 = vlaneseq
    %v1157 = vshrl.u32 %v1156, 7
    %v1158 = vsub.s32 0, %v1157
    %v1159 = vrot.slane %v23, %v1158
    %v1168 = vsel %vm734, %v1113, %v1106
    %v1169 = vsel %vm737, %v1120, %v1168
    %v1170 = vsel %vm740, %v1127, %v1169
    %v1171 = vsel %vm743, %v1134, %v1170
    %v1172 = vsel %vm746, %v1141, %v1171
    %v1173 = vsel %vm749, %v1148, %v1172
    %v1174 = vsel %vm751, %v1155, %v1173
    %v1176 = vadd.f32 %v1159, %v1174
    %v1177 = vsel %vm28, %v1176, 0.0
    %1178 = vadd.xlane.f32.xlu0 %v1177
    %v1179 = vpop.xlane.xlu0 %1178
    %v1180 = vmul.f32 %v1179, %v53
    %v1181 = vsub.f32 %v1176, %v1180
    %v1182 = vmul.f32 %v1181, %v1181
    %v1183 = vsel %vm28, %v1182, 0.0
    %1184 = vadd.xlane.f32.xlu0 %v1183
    %v1185 = vpop.xlane.xlu0 %1184
    %v1186 = vmul.f32 %v1185, %v53
    %v1187 = vadd.f32 %v1186, 1e-12
    %v1188 = vrsqrt.pop %v1187
    %v1189 = vmul.f32 %v1181, %v1188
    %v1190 = vlaneseq
    %v1191 = vshrl.u32 %v1190, 7
    %v1192 = vsub.s32 0, %v1191
    %v1193 = vrot.slane %v21, %v1192
    %v1194 = vmul.f32 %v1193, %v1189
    %v1195 = vlaneseq
    %v1196 = vshrl.u32 %v1195, 7
    %v1197 = vsub.s32 1, %v1196
    %v1198 = vrot.slane %v21, %v1197
    %v1199 = vadd.f32 %v1194, %v1198
    %1200 = vst.msk [vmem:[#allocation2] sm:$0xff] %vm28, %v1199
    %1201 = vset.pattern.permute.xlu0 1
    %1202 = vperm.xlu0 %1201, %v404
    %v1203 = vpop.permute.xlu0 %1202
    %1205 = vset.pattern.permute.xlu0 1
    %1206 = vperm.xlu0 %1205, %v405
    %v1207 = vpop.permute.xlu0 %1206
    %1209 = vset.pattern.permute.xlu0 1
    %1210 = vperm.xlu0 %1209, %v406
    %v1211 = vpop.permute.xlu0 %1210
    %1213 = vset.pattern.permute.xlu0 1
    %1214 = vperm.xlu0 %1213, %v407
    %v1215 = vpop.permute.xlu0 %1214
    %1217 = vset.pattern.permute.xlu0 1
    %1218 = vperm.xlu0 %1217, %v408
    %v1219 = vpop.permute.xlu0 %1218
    %1221 = vset.pattern.permute.xlu0 1
    %1222 = vperm.xlu0 %1221, %v409
    %v1223 = vpop.permute.xlu0 %1222
    %1225 = vset.pattern.permute.xlu0 1
    %1226 = vperm.xlu0 %1225, %v410
    %v1227 = vpop.permute.xlu0 %1226
    %1229 = vset.pattern.permute.xlu0 1
    %1230 = vperm.xlu0 %1229, %v411
    %v1231 = vpop.permute.xlu0 %1230
    %v1233 = vmul.f32 %v1203, %v1044
    %v1234 = vmul.f32 %v1207, %v1045
    %v1235 = vmul.f32 %v1211, %v1046
    %v1236 = vmul.f32 %v1215, %v1047
    %v1237 = vmul.f32 %v1219, %v1048
    %v1238 = vmul.f32 %v1223, %v1049
    %v1239 = vmul.f32 %v1227, %v1050
    %v1240 = vmul.f32 %v1231, %v1051
    %v1241 = vsel %vm28, %v1233, 0.0
    %v1242 = vrot.slane %v1241, 4
    %v1243 = vadd.f32 %v1241, %v1242
    %v1244 = vrot.slane %v1243, 2
    %v1245 = vadd.f32 %v1243, %v1244
    %v1246 = vrot.slane %v1245, 1
    %v1247 = vadd.f32 %v1245, %v1246
    %v1248 = vsel %vm28, %v1234, 0.0
    %v1249 = vrot.slane %v1248, 4
    %v1250 = vadd.f32 %v1248, %v1249
    %v1251 = vrot.slane %v1250, 2
    %v1252 = vadd.f32 %v1250, %v1251
    %v1253 = vrot.slane %v1252, 1
    %v1254 = vadd.f32 %v1252, %v1253
    %v1255 = vsel %vm28, %v1235, 0.0
    %v1256 = vrot.slane %v1255, 4
    %v1257 = vadd.f32 %v1255, %v1256
    %v1258 = vrot.slane %v1257, 2
    %v1259 = vadd.f32 %v1257, %v1258
    %v1260 = vrot.slane %v1259, 1
    %v1261 = vadd.f32 %v1259, %v1260
    %v1262 = vsel %vm28, %v1236, 0.0
    %v1263 = vrot.slane %v1262, 4
    %v1264 = vadd.f32 %v1262, %v1263
    %v1265 = vrot.slane %v1264, 2
    %v1266 = vadd.f32 %v1264, %v1265
    %v1267 = vrot.slane %v1266, 1
    %v1268 = vadd.f32 %v1266, %v1267
    %v1269 = vsel %vm28, %v1237, 0.0
    %v1270 = vrot.slane %v1269, 4
    %v1271 = vadd.f32 %v1269, %v1270
    %v1272 = vrot.slane %v1271, 2
    %v1273 = vadd.f32 %v1271, %v1272
    %v1274 = vrot.slane %v1273, 1
    %v1275 = vadd.f32 %v1273, %v1274
    %v1276 = vsel %vm28, %v1238, 0.0
    %v1277 = vrot.slane %v1276, 4
    %v1278 = vadd.f32 %v1276, %v1277
    %v1279 = vrot.slane %v1278, 2
    %v1280 = vadd.f32 %v1278, %v1279
    %v1281 = vrot.slane %v1280, 1
    %v1282 = vadd.f32 %v1280, %v1281
    %v1283 = vsel %vm28, %v1239, 0.0
    %v1284 = vrot.slane %v1283, 4
    %v1285 = vadd.f32 %v1283, %v1284
    %v1286 = vrot.slane %v1285, 2
    %v1287 = vadd.f32 %v1285, %v1286
    %v1288 = vrot.slane %v1287, 1
    %v1289 = vadd.f32 %v1287, %v1288
    %v1290 = vsel %vm28, %v1240, 0.0
    %v1291 = vrot.slane %v1290, 4
    %v1292 = vadd.f32 %v1290, %v1291
    %v1293 = vrot.slane %v1292, 2
    %v1294 = vadd.f32 %v1292, %v1293
    %v1295 = vrot.slane %v1294, 1
    %v1296 = vadd.f32 %v1294, %v1295
    %v1297 = vlaneseq
    %v1298 = vshrl.u32 %v1297, 7
    %v1299 = vsub.s32 1, %v1298
    %v1300 = vrot.slane %v23, %v1299
    %v1309 = vsel %vm734, %v1254, %v1247
    %v1310 = vsel %vm737, %v1261, %v1309
    %v1311 = vsel %vm740, %v1268, %v1310
    %v1312 = vsel %vm743, %v1275, %v1311
    %v1313 = vsel %vm746, %v1282, %v1312
    %v1314 = vsel %vm749, %v1289, %v1313
    %v1315 = vsel %vm751, %v1296, %v1314
    %v1317 = vadd.f32 %v1300, %v1315
    %v1318 = vsel %vm28, %v1317, 0.0
    %1319 = vadd.xlane.f32.xlu0 %v1318
    %v1320 = vpop.xlane.xlu0 %1319
    %v1321 = vmul.f32 %v1320, %v53
    %v1322 = vsub.f32 %v1317, %v1321
    %v1323 = vmul.f32 %v1322, %v1322
    %v1324 = vsel %vm28, %v1323, 0.0
    %1325 = vadd.xlane.f32.xlu0 %v1324
    %v1326 = vpop.xlane.xlu0 %1325
    %v1327 = vmul.f32 %v1326, %v53
    %v1328 = vadd.f32 %v1327, 1e-12
    %v1329 = vrsqrt.pop %v1328
    %v1330 = vmul.f32 %v1322, %v1329
    %v1331 = vmul.f32 %v1193, %v1330
    %v1332 = vadd.f32 %v1331, %v1198
    %1334 = vrot.lane.b32.xlu0 %v1332, 32
    %v1335 = vpop.permute.xlu0 %1334
    %vm1337 = vcmask 523520
    %1338 = vst.msk [vmem:[#allocation2] sm:$0xff] %vm1337, %v1335
    %1339 = vset.pattern.permute.xlu0 2
    %1340 = vperm.xlu0 %1339, %v404
    %v1341 = vpop.permute.xlu0 %1340
    %1343 = vset.pattern.permute.xlu0 2
    %1344 = vperm.xlu0 %1343, %v405
    %v1345 = vpop.permute.xlu0 %1344
    %1347 = vset.pattern.permute.xlu0 2
    %1348 = vperm.xlu0 %1347, %v406
    %v1349 = vpop.permute.xlu0 %1348
    %1351 = vset.pattern.permute.xlu0 2
    %1352 = vperm.xlu0 %1351, %v407
    %v1353 = vpop.permute.xlu0 %1352
    %1355 = vset.pattern.permute.xlu0 2
    %1356 = vperm.xlu0 %1355, %v408
    %v1357 = vpop.permute.xlu0 %1356
    %1359 = vset.pattern.permute.xlu0 2
    %1360 = vperm.xlu0 %1359, %v409
    %v1361 = vpop.permute.xlu0 %1360
    %1363 = vset.pattern.permute.xlu0 2
    %1364 = vperm.xlu0 %1363, %v410
    %v1365 = vpop.permute.xlu0 %1364
    %1367 = vset.pattern.permute.xlu0 2
    %1368 = vperm.xlu0 %1367, %v411
    %v1369 = vpop.permute.xlu0 %1368
    %v1371 = vmul.f32 %v1341, %v1044
    %v1372 = vmul.f32 %v1345, %v1045
    %v1373 = vmul.f32 %v1349, %v1046
    %v1374 = vmul.f32 %v1353, %v1047
    %v1375 = vmul.f32 %v1357, %v1048
    %v1376 = vmul.f32 %v1361, %v1049
    %v1377 = vmul.f32 %v1365, %v1050
    %v1378 = vmul.f32 %v1369, %v1051
    %v1379 = vsel %vm28, %v1371, 0.0
    %v1380 = vrot.slane %v1379, 4
    %v1381 = vadd.f32 %v1379, %v1380
    %v1382 = vrot.slane %v1381, 2
    %v1383 = vadd.f32 %v1381, %v1382
    %v1384 = vrot.slane %v1383, 1
    %v1385 = vadd.f32 %v1383, %v1384
    %v1386 = vsel %vm28, %v1372, 0.0
    %v1387 = vrot.slane %v1386, 4
    %v1388 = vadd.f32 %v1386, %v1387
    %v1389 = vrot.slane %v1388, 2
    %v1390 = vadd.f32 %v1388, %v1389
    %v1391 = vrot.slane %v1390, 1
    %v1392 = vadd.f32 %v1390, %v1391
    %v1393 = vsel %vm28, %v1373, 0.0
    %v1394 = vrot.slane %v1393, 4
    %v1395 = vadd.f32 %v1393, %v1394
    %v1396 = vrot.slane %v1395, 2
    %v1397 = vadd.f32 %v1395, %v1396
    %v1398 = vrot.slane %v1397, 1
    %v1399 = vadd.f32 %v1397, %v1398
    %v1400 = vsel %vm28, %v1374, 0.0
    %v1401 = vrot.slane %v1400, 4
    %v1402 = vadd.f32 %v1400, %v1401
    %v1403 = vrot.slane %v1402, 2
    %v1404 = vadd.f32 %v1402, %v1403
    %v1405 = vrot.slane %v1404, 1
    %v1406 = vadd.f32 %v1404, %v1405
    %v1407 = vsel %vm28, %v1375, 0.0
    %v1408 = vrot.slane %v1407, 4
    %v1409 = vadd.f32 %v1407, %v1408
    %v1410 = vrot.slane %v1409, 2
    %v1411 = vadd.f32 %v1409, %v1410
    %v1412 = vrot.slane %v1411, 1
    %v1413 = vadd.f32 %v1411, %v1412
    %v1414 = vsel %vm28, %v1376, 0.0
    %v1415 = vrot.slane %v1414, 4
    %v1416 = vadd.f32 %v1414, %v1415
    %v1417 = vrot.slane %v1416, 2
    %v1418 = vadd.f32 %v1416, %v1417
    %v1419 = vrot.slane %v1418, 1
    %v1420 = vadd.f32 %v1418, %v1419
    %v1421 = vsel %vm28, %v1377, 0.0
    %v1422 = vrot.slane %v1421, 4
    %v1423 = vadd.f32 %v1421, %v1422
    %v1424 = vrot.slane %v1423, 2
    %v1425 = vadd.f32 %v1423, %v1424
    %v1426 = vrot.slane %v1425, 1
    %v1427 = vadd.f32 %v1425, %v1426
    %v1428 = vsel %vm28, %v1378, 0.0
    %v1429 = vrot.slane %v1428, 4
    %v1430 = vadd.f32 %v1428, %v1429
    %v1431 = vrot.slane %v1430, 2
    %v1432 = vadd.f32 %v1430, %v1431
    %v1433 = vrot.slane %v1432, 1
    %v1434 = vadd.f32 %v1432, %v1433
    %v1435 = vlaneseq
    %v1436 = vshrl.u32 %v1435, 7
    %v1437 = vsub.s32 2, %v1436
    %v1438 = vrot.slane %v23, %v1437
    %v1447 = vsel %vm734, %v1392, %v1385
    %v1448 = vsel %vm737, %v1399, %v1447
    %v1449 = vsel %vm740, %v1406, %v1448
    %v1450 = vsel %vm743, %v1413, %v1449
    %v1451 = vsel %vm746, %v1420, %v1450
    %v1452 = vsel %vm749, %v1427, %v1451
    %v1453 = vsel %vm751, %v1434, %v1452
    %v1455 = vadd.f32 %v1438, %v1453
    %v1456 = vsel %vm28, %v1455, 0.0
    %1457 = vadd.xlane.f32.xlu0 %v1456
    %v1458 = vpop.xlane.xlu0 %1457
    %v1459 = vmul.f32 %v1458, %v53
    %v1460 = vsub.f32 %v1455, %v1459
    %v1461 = vmul.f32 %v1460, %v1460
    %v1462 = vsel %vm28, %v1461, 0.0
    %1463 = vadd.xlane.f32.xlu0 %v1462
    %v1464 = vpop.xlane.xlu0 %1463
    %v1465 = vmul.f32 %v1464, %v53
    %v1466 = vadd.f32 %v1465, 1e-12
    %v1467 = vrsqrt.pop %v1466
    %v1468 = vmul.f32 %v1460, %v1467
    %v1469 = vmul.f32 %v1193, %v1468
    %v1470 = vadd.f32 %v1469, %v1198
    %1472 = vrot.lane.b32.xlu0 %v1470, 64
    %v1473 = vpop.permute.xlu0 %1472
    %vm1475 = vcmask 785920
    %1476 = vst.msk [vmem:[#allocation2] sm:$0xff] %vm1475, %v1473
    %1477 = vset.pattern.permute.xlu0 3
    %1478 = vperm.xlu0 %1477, %v404
    %v1479 = vpop.permute.xlu0 %1478
    %1481 = vset.pattern.permute.xlu0 3
    %1482 = vperm.xlu0 %1481, %v405
    %v1483 = vpop.permute.xlu0 %1482
    %1485 = vset.pattern.permute.xlu0 3
    %1486 = vperm.xlu0 %1485, %v406
    %v1487 = vpop.permute.xlu0 %1486
    %1489 = vset.pattern.permute.xlu0 3
    %1490 = vperm.xlu0 %1489, %v407
    %v1491 = vpop.permute.xlu0 %1490
    %1493 = vset.pattern.permute.xlu0 3
    %1494 = vperm.xlu0 %1493, %v408
    %v1495 = vpop.permute.xlu0 %1494
    %1497 = vset.pattern.permute.xlu0 3
    %1498 = vperm.xlu0 %1497, %v409
    %v1499 = vpop.permute.xlu0 %1498
    %1501 = vset.pattern.permute.xlu0 3
    %1502 = vperm.xlu0 %1501, %v410
    %v1503 = vpop.permute.xlu0 %1502
    %1505 = vset.pattern.permute.xlu0 3
    %1506 = vperm.xlu0 %1505, %v411
    %v1507 = vpop.permute.xlu0 %1506
    %v1509 = vmul.f32 %v1479, %v1044
    %v1510 = vmul.f32 %v1483, %v1045
    %v1511 = vmul.f32 %v1487, %v1046
    %v1512 = vmul.f32 %v1491, %v1047
    %v1513 = vmul.f32 %v1495, %v1048
    %v1514 = vmul.f32 %v1499, %v1049
    %v1515 = vmul.f32 %v1503, %v1050
    %v1516 = vmul.f32 %v1507, %v1051
    %v1517 = vsel %vm28, %v1509, 0.0
    %v1518 = vrot.slane %v1517, 4
    %v1519 = vadd.f32 %v1517, %v1518
    %v1520 = vrot.slane %v1519, 2
    %v1521 = vadd.f32 %v1519, %v1520
    %v1522 = vrot.slane %v1521, 1
    %v1523 = vadd.f32 %v1521, %v1522
    %v1524 = vsel %vm28, %v1510, 0.0
    %v1525 = vrot.slane %v1524, 4
    %v1526 = vadd.f32 %v1524, %v1525
    %v1527 = vrot.slane %v1526, 2
    %v1528 = vadd.f32 %v1526, %v1527
    %v1529 = vrot.slane %v1528, 1
    %v1530 = vadd.f32 %v1528, %v1529
    %v1531 = vsel %vm28, %v1511, 0.0
    %v1532 = vrot.slane %v1531, 4
    %v1533 = vadd.f32 %v1531, %v1532
    %v1534 = vrot.slane %v1533, 2
    %v1535 = vadd.f32 %v1533, %v1534
    %v1536 = vrot.slane %v1535, 1
    %v1537 = vadd.f32 %v1535, %v1536
    %v1538 = vsel %vm28, %v1512, 0.0
    %v1539 = vrot.slane %v1538, 4
    %v1540 = vadd.f32 %v1538, %v1539
    %v1541 = vrot.slane %v1540, 2
    %v1542 = vadd.f32 %v1540, %v1541
    %v1543 = vrot.slane %v1542, 1
    %v1544 = vadd.f32 %v1542, %v1543
    %v1545 = vsel %vm28, %v1513, 0.0
    %v1546 = vrot.slane %v1545, 4
    %v1547 = vadd.f32 %v1545, %v1546
    %v1548 = vrot.slane %v1547, 2
    %v1549 = vadd.f32 %v1547, %v1548
    %v1550 = vrot.slane %v1549, 1
    %v1551 = vadd.f32 %v1549, %v1550
    %v1552 = vsel %vm28, %v1514, 0.0
    %v1553 = vrot.slane %v1552, 4
    %v1554 = vadd.f32 %v1552, %v1553
    %v1555 = vrot.slane %v1554, 2
    %v1556 = vadd.f32 %v1554, %v1555
    %v1557 = vrot.slane %v1556, 1
    %v1558 = vadd.f32 %v1556, %v1557
    %v1559 = vsel %vm28, %v1515, 0.0
    %v1560 = vrot.slane %v1559, 4
    %v1561 = vadd.f32 %v1559, %v1560
    %v1562 = vrot.slane %v1561, 2
    %v1563 = vadd.f32 %v1561, %v1562
    %v1564 = vrot.slane %v1563, 1
    %v1565 = vadd.f32 %v1563, %v1564
    %v1566 = vsel %vm28, %v1516, 0.0
    %v1567 = vrot.slane %v1566, 4
    %v1568 = vadd.f32 %v1566, %v1567
    %v1569 = vrot.slane %v1568, 2
    %v1570 = vadd.f32 %v1568, %v1569
    %v1571 = vrot.slane %v1570, 1
    %v1572 = vadd.f32 %v1570, %v1571
    %v1573 = vlaneseq
    %v1574 = vshrl.u32 %v1573, 7
    %v1575 = vsub.s32 3, %v1574
    %v1576 = vrot.slane %v23, %v1575
    %v1585 = vsel %vm734, %v1530, %v1523
    %v1586 = vsel %vm737, %v1537, %v1585
    %v1587 = vsel %vm740, %v1544, %v1586
    %v1588 = vsel %vm743, %v1551, %v1587
    %v1589 = vsel %vm746, %v1558, %v1588
    %v1590 = vsel %vm749, %v1565, %v1589
    %v1591 = vsel %vm751, %v1572, %v1590
    %v1593 = vadd.f32 %v1576, %v1591
    %v1594 = vsel %vm28, %v1593, 0.0
    %1595 = vadd.xlane.f32.xlu0 %v1594
    %v1596 = vpop.xlane.xlu0 %1595
    %v1597 = vmul.f32 %v1596, %v53
    %v1598 = vsub.f32 %v1593, %v1597
    %v1599 = vmul.f32 %v1598, %v1598
    %v1600 = vsel %vm28, %v1599, 0.0
    %1601 = vadd.xlane.f32.xlu0 %v1600
    %v1602 = vpop.xlane.xlu0 %1601
    %v1603 = vmul.f32 %v1602, %v53
    %v1604 = vadd.f32 %v1603, 1e-12
    %v1605 = vrsqrt.pop %v1604
    %v1606 = vmul.f32 %v1598, %v1605
    %v1607 = vmul.f32 %v1193, %v1606
    %v1608 = vadd.f32 %v1607, %v1198
    %1610 = vrot.lane.b32.xlu0 %v1608, 96
    %v1611 = vpop.permute.xlu0 %1610
    %vm1613 = vcmask 1048320
    %1614 = vst.msk [vmem:[#allocation2] sm:$0xff] %vm1613, %v1611
    // Predicated region
    $region10: #{tpu_custom_call.1} parent=1 // pred_check
      _
    $region11: #{tpu_custom_call.1} parent=1 // pred_check_branch
      %1616 = sbr.rel (0) target = $region13
    $region12: #{tpu_custom_call.1} parent=1 // pred_region
      %s1618 = ssub.s32 128, 128
      %1619 = vsyncadd [#allocation3], %s1618
      %s1621 = sshll.u32 [#allocation2], 4
      %s1622 = int_to_ptr.vmem [resolvable:$true] %s1621
      %1624 = dma.vmem_to_hbm [thread:$0]  %s1622, 128, %s2, [#allocation3]
    $region13: #{tpu_custom_call.1} parent=1 // pred_fallthru
      _
    // Predicated region
    $region14: #{tpu_custom_call.1} parent=1 // pred_check
      _
    $region15: #{tpu_custom_call.1} parent=1 // pred_check_branch
      %1626 = sbr.rel (0) target = $region17
    $region16: #{tpu_custom_call.1} parent=1 // pred_region
      %1627 = dma.done [#allocation3], 128
    $region17: #{tpu_custom_call.1} parent=1 // pred_fallthru
      _
    %1628 = vsyncpa [#allocation3], 1

</llo_original>
